<compile_context>
chip_gen: v5e
topology: v5e:2x2
jax: 0.10.0
libtpu: 0.0.40
codegen_flags: <defaults>
</compile_context>

<pallas_src>
import math
import functools

import jax
import jax.numpy as jnp
from jax.experimental import pallas as pl
from jax.experimental.pallas import tpu as pltpu

# ---------------- model hyper-params (small, consistent with the module) -------------
HIDDEN = 32      # hidden_dim
NHEAD = 8        # nhead  -> head_dim = 4
MLP_DIM = 64     # mlp_dim (scaled down from 2048 for the small test)
BATCH = 2
SEQ = 8
EPS = 1e-5


# ---------------- packed small-parameter layout (128-lane-aligned segments) -----------
def _param_segments(d, m):
    return [('bqkv', 3 * d), ('bo', d), ('g1', d), ('be1', d),
            ('b1', m), ('b2', d), ('g2', d), ('be2', d)]


def _param_offsets(d, m):
    offs, cur = {}, 0
    for name, w in _param_segments(d, m):
        offs[name] = cur
        cur += ((w + 127) // 128) * 128       # 128-lane aligned start for every segment
    return offs, cur


# ------------------------------------- kernel ----------------------------------------
def _vit_block_kernel(x_ref,
                      wqkv_ref,      # (D, 3D)  in-proj, pre-transposed, scale folded into Wq
                      wo_ref,        # (D, D)   out-proj, pre-transposed
                      w1_ref,        # (D, M)   mlp fc1, pre-transposed
                      w2_ref,        # (M, D)   mlp fc2, pre-transposed
                      pk_ref,        # (1, P)   packed biases / LN params
                      o_ref,
                      *, nhead, d, m, offs):
    x = x_ref[...].astype(jnp.float32)                    # (S, D) -- one batch element
    hd = d // nhead

    def pvec(name, width):                                # (1, width) slice of packed params
        lo = offs[name]
        return pk_ref[:, lo:lo + width]

    # ---- fused QKV projection (single MXU matmul, 1/sqrt(hd) already folded into Wq/bq) ----
    qkv = jnp.dot(x, wqkv_ref[...], preferred_element_type=jnp.float32) + pvec('bqkv', 3 * d)
    q = qkv[:, :d]
    k = qkv[:, d:2 * d]
    v = qkv[:, 2 * d:]

    # ---- multi-head self-attention; out-projection folded into the head loop (no concat) ----
    attn = None
    for h in range(nhead):
        lo = h * hd
        qh = q[:, lo:lo + hd]                              # (S, hd)
        kh = k[:, lo:lo + hd]
        vh = v[:, lo:lo + hd]
        s = jax.lax.dot_general(qh, kh, (((1,), (1,)), ((), ())),
                                preferred_element_type=jnp.float32)      # (S, S)
        s = s - jnp.max(s, axis=-1, keepdims=True)
        p = jnp.exp(s)
        p = p * pl.reciprocal(jnp.sum(p, axis=-1, keepdims=True), approx=True)  # EUP recip
        ctx = jnp.dot(p, vh, preferred_element_type=jnp.float32)         # (S, hd)
        contrib = jnp.dot(ctx, wo_ref[lo:lo + hd, :],
                          preferred_element_type=jnp.float32)            # (S, D)
        attn = contrib if attn is None else attn + contrib

    # ---- residual + LayerNorm 1 (biased variance, matches PyTorch) ----
    y = x + attn + pvec('bo', d)
    mu = jnp.mean(y, axis=-1, keepdims=True)
    var = jnp.mean((y - mu) ** 2, axis=-1, keepdims=True)
    x1 = (y - mu) * jax.lax.rsqrt(var + EPS) * pvec('g1', d) + pvec('be1', d)

    # ---- MLP: Linear -> GELU(tanh approx, EUP) -> Linear (dropout = identity, eval) ----
    h1 = jnp.dot(x1, w1_ref[...], preferred_element_type=jnp.float32) + pvec('b1', m)
    c = math.sqrt(2.0 / math.pi)
    h1 = 0.5 * h1 * (1.0 + jnp.tanh(c * (h1 + 0.044715 * h1 * h1 * h1)))
    mo = jnp.dot(h1, w2_ref[...], preferred_element_type=jnp.float32) + pvec('b2', d)

    # ---- residual + LayerNorm 2 ----
    z = x1 + mo
    mu2 = jnp.mean(z, axis=-1, keepdims=True)
    var2 = jnp.mean((z - mu2) ** 2, axis=-1, keepdims=True)
    out = (z - mu2) * jax.lax.rsqrt(var2 + EPS) * pvec('g2', d) + pvec('be2', d)

    o_ref[...] = out.astype(o_ref.dtype)


# --------------------------------- wrapper / builder ----------------------------------
def build_vit_block(d, m, nhead):
    offs, packed_width = _param_offsets(d, m)
    kernel = functools.partial(_vit_block_kernel, nhead=nhead, d=d, m=m, offs=offs)

    @jax.jit
    def fwd(x, prep):
        B, S, _ = x.shape
        act_spec = pl.BlockSpec((None, S, d), lambda b: (b, 0, 0))   # per-batch activation tile

        def wspec(shape):
            # constant index_map: weights DMA'd once, VMEM-resident across grid steps
            return pl.BlockSpec(shape, lambda b, _s=shape: (0,) * len(_s))

        return pl.pallas_call(
            kernel,
            out_shape=jax.ShapeDtypeStruct((B, S, d), x.dtype),
            grid=(B,),                                   # batch axis -> pipelining / dual-TC
            in_specs=[act_spec,
                      wspec((d, 3 * d)),
                      wspec((d, d)),
                      wspec((d, m)),
                      wspec((m, d)),
                      wspec((1, packed_width))],
            out_specs=act_spec,
            compiler_params=pltpu.CompilerParams(dimension_semantics=("parallel",)),
        )(x, prep['wqkv_t'], prep['wo_t'], prep['w1_t'], prep['w2_t'], prep['packed'])

    return fwd


def prepare_params(params, nhead):
    """One-time parameter preparation (outside the per-call jitted forward)."""
    d = params['wo'].shape[0]
    m = params['w1'].shape[0]
    hd = d // nhead
    scale = 1.0 / math.sqrt(hd)

    wqkv_t = jnp.asarray(params['wqkv'], jnp.float32).T          # (D, 3D), (in, out) layout
    wqkv_t = wqkv_t.at[:, :d].multiply(scale)                    # fold softmax scale into Wq
    bqkv = jnp.asarray(params['bqkv'], jnp.float32)
    bqkv = bqkv.at[:, :d].multiply(scale)                        # ... and into bq

    offs, width = _param_offsets(d, m)
    vals = {'bqkv': bqkv, 'bo': params['bo'], 'g1': params['g1'], 'be1': params['be1'],
            'b1': params['b1'], 'b2': params['b2'], 'g2': params['g2'], 'be2': params['be2']}
    packed = jnp.zeros((1, width), jnp.float32)
    for name, w in _param_segments(d, m):
        packed = packed.at[:, offs[name]:offs[name] + w].set(
            jnp.asarray(vals[name], jnp.float32).reshape(1, w))

    return {
        'wqkv_t': wqkv_t,
        'wo_t': jnp.asarray(params['wo'], jnp.float32).T,        # (D, D)
        'w1_t': jnp.asarray(params['w1'], jnp.float32).T,        # (D, M)
        'w2_t': jnp.asarray(params['w2'], jnp.float32).T,        # (M, D)
        'packed': packed,
    }


# ---------------- pure-JAX reference (exact erf GELU / exact softmax, matches PyTorch) --------
def vit_block_ref(x, p):
    D = x.shape[-1]
    H = NHEAD
    hd = D // H
    qkv = x @ p['wqkv'].T + p['bqkv'][0]
    q, k, v = qkv[..., :D], qkv[..., D:2 * D], qkv[..., 2 * D:]
    B, S, _ = x.shape
    qh = q.reshape(B, S, H, hd)
    kh = k.reshape(B, S, H, hd)
    vh = v.reshape(B, S, H, hd)
    scores = jnp.einsum('bqhd,bkhd->bhqk', qh, kh) / math.sqrt(hd)
    w = jax.nn.softmax(scores, axis=-1)
    ctx = jnp.einsum('bhqk,bkhd->bqhd', w, vh).reshape(B, S, D)
    attn = ctx @ p['wo'].T + p['bo'][0]

    def ln(z, g, b):
        mu = z.mean(-1, keepdims=True)
        var = ((z - mu) ** 2).mean(-1, keepdims=True)
        return (z - mu) / jnp.sqrt(var + EPS) * g[0] + b[0]

    x1 = ln(x + attn, p['g1'], p['be1'])
    h = x1 @ p['w1'].T + p['b1'][0]
    h = 0.5 * h * (1.0 + jax.lax.erf(h / math.sqrt(2.0)))   # exact GELU (PyTorch default)
    m = h @ p['w2'].T + p['b2'][0]
    return ln(x1 + m, p['g2'], p['be2'])


def init_params(key, D, M):
    keys = jax.random.split(key, 10)
    s = 0.1
    return {
        'wqkv': s * jax.random.normal(keys[0], (3 * D, D), jnp.float32),
        'bqkv': s * jax.random.normal(keys[1], (1, 3 * D), jnp.float32),
        'wo':   s * jax.random.normal(keys[2], (D, D), jnp.float32),
        'bo':   s * jax.random.normal(keys[3], (1, D), jnp.float32),
        'g1':   jnp.ones((1, D), jnp.float32),
        'be1':  jnp.zeros((1, D), jnp.float32),
        'w1':   s * jax.random.normal(keys[4], (M, D), jnp.float32),
        'b1':   s * jax.random.normal(keys[5], (1, M), jnp.float32),
        'w2':   s * jax.random.normal(keys[6], (D, M), jnp.float32),
        'b2':   s * jax.random.normal(keys[7], (1, D), jnp.float32),
        'g2':   jnp.ones((1, D), jnp.float32),
        'be2':  jnp.zeros((1, D), jnp.float32),
    }


if __name__ == "__main__":
    key = jax.random.PRNGKey(0)
    kx, kp = jax.random.split(key)
    x = jax.random.normal(kx, (BATCH, SEQ, HIDDEN), jnp.float32)
    params = init_params(kp, HIDDEN, MLP_DIM)

    prep = prepare_params(params, NHEAD)          # one-time param prep (outside the hot path)
    vit_block = build_vit_block(HIDDEN, MLP_DIM, NHEAD)

    out = jax.block_until_ready(vit_block(x, prep))

    ref = vit_block_ref(x, params)
    assert out.shape == (BATCH, SEQ, HIDDEN)
    # tolerance loosened vs exact-f32 reference: kernel uses approx-reciprocal softmax and
    # tanh-approx GELU (per perf review); both introduce ~1e-3-level deviations.
    assert jnp.allclose(out, ref, atol=1e-2, rtol=1e-2), \
        f"max err {jnp.max(jnp.abs(out - ref))}"
    print("KERNEL_OK")
</pallas_src>

<mosaic_0001>
module attributes {stable_mosaic.version = 11 : i64} {
  func.func @_vit_block_kernel(%arg0: i32, %arg1: memref<1x8x32xf32, #tpu.memory_space<vmem>>, %arg2: memref<32x96xf32, #tpu.memory_space<vmem>>, %arg3: memref<32x32xf32, #tpu.memory_space<vmem>>, %arg4: memref<32x64xf32, #tpu.memory_space<vmem>>, %arg5: memref<64x32xf32, #tpu.memory_space<vmem>>, %arg6: memref<1x1024xf32, #tpu.memory_space<vmem>>, %arg7: memref<1x8x32xf32, #tpu.memory_space<vmem>>) attributes {dimension_semantics = [#tpu.dimension_semantics<parallel>], iteration_bounds = array<i64: 2>, scalar_prefetch = 0 : i64, scratch_operands = 0 : i64, tpu.core_type = #tpu.core_type<tc>, window_params = [{transform_indices = @transform_0, window_bounds = array<i64: 1, 8, 32>}, {pipeline_mode = #tpu.pipeline_mode<synchronous>, transform_indices = @transform_1, window_bounds = array<i64: 32, 96>}, {pipeline_mode = #tpu.pipeline_mode<synchronous>, transform_indices = @transform_2, window_bounds = array<i64: 32, 32>}, {pipeline_mode = #tpu.pipeline_mode<synchronous>, transform_indices = @transform_3, window_bounds = array<i64: 32, 64>}, {pipeline_mode = #tpu.pipeline_mode<synchronous>, transform_indices = @transform_4, window_bounds = array<i64: 64, 32>}, {pipeline_mode = #tpu.pipeline_mode<synchronous>, transform_indices = @transform_5, window_bounds = array<i64: 1, 1024>}, {transform_indices = @transform_6, window_bounds = array<i64: 1, 8, 32>}]} {
    %c0 = arith.constant 0 : index
    %c0_0 = arith.constant 0 : index
    %c0_1 = arith.constant 0 : index
    %0 = vector.load %arg1[%c0, %c0_0, %c0_1] : memref<1x8x32xf32, #tpu.memory_space<vmem>>, vector<1x8x32xf32>
    %1 = vector.shape_cast %0 : vector<1x8x32xf32> to vector<8x32xf32>
    %c0_2 = arith.constant 0 : index
    %c0_3 = arith.constant 0 : index
    %2 = vector.load %arg2[%c0_2, %c0_3] : memref<32x96xf32, #tpu.memory_space<vmem>>, vector<32x96xf32>
    %cst = arith.constant dense<0.000000e+00> : vector<8x96xf32>
    %3 = tpu.matmul %1, %2, %cst {dimension_numbers = #tpu.dot_dimension_numbers<[1], [0], [0], [1], [0, 0, 1, 1], [], []>} : vector<8x32xf32>, vector<32x96xf32>, vector<8x96xf32> -> vector<8x96xf32>
    %c0_4 = arith.constant 0 : index
    %c0_5 = arith.constant 0 : index
    %4 = vector.load %arg6[%c0_4, %c0_5] : memref<1x1024xf32, #tpu.memory_space<vmem>>, vector<1x96xf32>
    %5 = vector.broadcast %4 : vector<1x96xf32> to vector<8x96xf32>
    %6 = arith.addf %3, %5 : vector<8x96xf32>
    %7 = vector.extract_strided_slice %6 {offsets = [0, 0], sizes = [8, 32], strides = [1, 1]} : vector<8x96xf32> to vector<8x32xf32>
    %8 = vector.extract_strided_slice %6 {offsets = [0, 32], sizes = [8, 32], strides = [1, 1]} : vector<8x96xf32> to vector<8x32xf32>
    %9 = vector.extract_strided_slice %6 {offsets = [0, 64], sizes = [8, 32], strides = [1, 1]} : vector<8x96xf32> to vector<8x32xf32>
    %10 = vector.extract_strided_slice %7 {offsets = [0, 0], sizes = [8, 4], strides = [1, 1]} : vector<8x32xf32> to vector<8x4xf32>
    %11 = vector.extract_strided_slice %8 {offsets = [0, 0], sizes = [8, 4], strides = [1, 1]} : vector<8x32xf32> to vector<8x4xf32>
    %12 = vector.extract_strided_slice %9 {offsets = [0, 0], sizes = [8, 4], strides = [1, 1]} : vector<8x32xf32> to vector<8x4xf32>
    %cst_6 = arith.constant dense<0.000000e+00> : vector<8x8xf32>
    %13 = tpu.matmul %10, %11, %cst_6 {dimension_numbers = #tpu.dot_dimension_numbers<[1], [1], [0], [0], [0, 0, 1, 0], [], []>} : vector<8x4xf32>, vector<8x4xf32>, vector<8x8xf32> -> vector<8x8xf32>
    %cst_7 = arith.constant dense<0xFF800000> : vector<8xf32>
    %14 = vector.multi_reduction <maximumf>, %13, %cst_7 [1] : vector<8x8xf32> to vector<8xf32>
    %15 = vector.shape_cast %14 : vector<8xf32> to vector<8x1xf32>
    %16 = vector.broadcast %15 : vector<8x1xf32> to vector<8x8xf32>
    %17 = arith.subf %13, %16 : vector<8x8xf32>
    %18 = math.exp %17 : vector<8x8xf32>
    %cst_8 = arith.constant dense<0.000000e+00> : vector<8xf32>
    %19 = vector.multi_reduction <add>, %18, %cst_8 [1] : vector<8x8xf32> to vector<8xf32>
    %20 = vector.shape_cast %19 : vector<8xf32> to vector<8x1xf32>
    %21 = tpu.reciprocal %20 {approx = true} : vector<8x1xf32> -> vector<8x1xf32>
    %22 = vector.broadcast %21 : vector<8x1xf32> to vector<8x8xf32>
    %23 = arith.mulf %18, %22 : vector<8x8xf32>
    %cst_9 = arith.constant dense<0.000000e+00> : vector<8x4xf32>
    %24 = tpu.matmul %23, %12, %cst_9 {dimension_numbers = #tpu.dot_dimension_numbers<[1], [0], [0], [1], [0, 0, 1, 1], [], []>} : vector<8x8xf32>, vector<8x4xf32>, vector<8x4xf32> -> vector<8x4xf32>
    %c0_10 = arith.constant 0 : index
    %c0_11 = arith.constant 0 : index
    %25 = vector.load %arg3[%c0_10, %c0_11] : memref<32x32xf32, #tpu.memory_space<vmem>>, vector<4x32xf32>
    %cst_12 = arith.constant dense<0.000000e+00> : vector<8x32xf32>
    %26 = tpu.matmul %24, %25, %cst_12 {dimension_numbers = #tpu.dot_dimension_numbers<[1], [0], [0], [1], [0, 0, 1, 1], [], []>} : vector<8x4xf32>, vector<4x32xf32>, vector<8x32xf32> -> vector<8x32xf32>
    %27 = vector.extract_strided_slice %7 {offsets = [0, 4], sizes = [8, 4], strides = [1, 1]} : vector<8x32xf32> to vector<8x4xf32>
    %28 = vector.extract_strided_slice %8 {offsets = [0, 4], sizes = [8, 4], strides = [1, 1]} : vector<8x32xf32> to vector<8x4xf32>
    %29 = vector.extract_strided_slice %9 {offsets = [0, 4], sizes = [8, 4], strides = [1, 1]} : vector<8x32xf32> to vector<8x4xf32>
    %cst_13 = arith.constant dense<0.000000e+00> : vector<8x8xf32>
    %30 = tpu.matmul %27, %28, %cst_13 {dimension_numbers = #tpu.dot_dimension_numbers<[1], [1], [0], [0], [0, 0, 1, 0], [], []>} : vector<8x4xf32>, vector<8x4xf32>, vector<8x8xf32> -> vector<8x8xf32>
    %cst_14 = arith.constant dense<0xFF800000> : vector<8xf32>
    %31 = vector.multi_reduction <maximumf>, %30, %cst_14 [1] : vector<8x8xf32> to vector<8xf32>
    %32 = vector.shape_cast %31 : vector<8xf32> to vector<8x1xf32>
    %33 = vector.broadcast %32 : vector<8x1xf32> to vector<8x8xf32>
    %34 = arith.subf %30, %33 : vector<8x8xf32>
    %35 = math.exp %34 : vector<8x8xf32>
    %cst_15 = arith.constant dense<0.000000e+00> : vector<8xf32>
    %36 = vector.multi_reduction <add>, %35, %cst_15 [1] : vector<8x8xf32> to vector<8xf32>
    %37 = vector.shape_cast %36 : vector<8xf32> to vector<8x1xf32>
    %38 = tpu.reciprocal %37 {approx = true} : vector<8x1xf32> -> vector<8x1xf32>
    %39 = vector.broadcast %38 : vector<8x1xf32> to vector<8x8xf32>
    %40 = arith.mulf %35, %39 : vector<8x8xf32>
    %cst_16 = arith.constant dense<0.000000e+00> : vector<8x4xf32>
    %41 = tpu.matmul %40, %29, %cst_16 {dimension_numbers = #tpu.dot_dimension_numbers<[1], [0], [0], [1], [0, 0, 1, 1], [], []>} : vector<8x8xf32>, vector<8x4xf32>, vector<8x4xf32> -> vector<8x4xf32>
    %c4 = arith.constant 4 : index
    %c0_17 = arith.constant 0 : index
    %42 = vector.load %arg3[%c4, %c0_17] : memref<32x32xf32, #tpu.memory_space<vmem>>, vector<4x32xf32>
    %cst_18 = arith.constant dense<0.000000e+00> : vector<8x32xf32>
    %43 = tpu.matmul %41, %42, %cst_18 {dimension_numbers = #tpu.dot_dimension_numbers<[1], [0], [0], [1], [0, 0, 1, 1], [], []>} : vector<8x4xf32>, vector<4x32xf32>, vector<8x32xf32> -> vector<8x32xf32>
    %44 = arith.addf %26, %43 : vector<8x32xf32>
    %45 = vector.extract_strided_slice %7 {offsets = [0, 8], sizes = [8, 4], strides = [1, 1]} : vector<8x32xf32> to vector<8x4xf32>
    %46 = vector.extract_strided_slice %8 {offsets = [0, 8], sizes = [8, 4], strides = [1, 1]} : vector<8x32xf32> to vector<8x4xf32>
    %47 = vector.extract_strided_slice %9 {offsets = [0, 8], sizes = [8, 4], strides = [1, 1]} : vector<8x32xf32> to vector<8x4xf32>
    %cst_19 = arith.constant dense<0.000000e+00> : vector<8x8xf32>
    %48 = tpu.matmul %45, %46, %cst_19 {dimension_numbers = #tpu.dot_dimension_numbers<[1], [1], [0], [0], [0, 0, 1, 0], [], []>} : vector<8x4xf32>, vector<8x4xf32>, vector<8x8xf32> -> vector<8x8xf32>
    %cst_20 = arith.constant dense<0xFF800000> : vector<8xf32>
    %49 = vector.multi_reduction <maximumf>, %48, %cst_20 [1] : vector<8x8xf32> to vector<8xf32>
    %50 = vector.shape_cast %49 : vector<8xf32> to vector<8x1xf32>
    %51 = vector.broadcast %50 : vector<8x1xf32> to vector<8x8xf32>
    %52 = arith.subf %48, %51 : vector<8x8xf32>
    %53 = math.exp %52 : vector<8x8xf32>
    %cst_21 = arith.constant dense<0.000000e+00> : vector<8xf32>
    %54 = vector.multi_reduction <add>, %53, %cst_21 [1] : vector<8x8xf32> to vector<8xf32>
    %55 = vector.shape_cast %54 : vector<8xf32> to vector<8x1xf32>
    %56 = tpu.reciprocal %55 {approx = true} : vector<8x1xf32> -> vector<8x1xf32>
    %57 = vector.broadcast %56 : vector<8x1xf32> to vector<8x8xf32>
    %58 = arith.mulf %53, %57 : vector<8x8xf32>
    %cst_22 = arith.constant dense<0.000000e+00> : vector<8x4xf32>
    %59 = tpu.matmul %58, %47, %cst_22 {dimension_numbers = #tpu.dot_dimension_numbers<[1], [0], [0], [1], [0, 0, 1, 1], [], []>} : vector<8x8xf32>, vector<8x4xf32>, vector<8x4xf32> -> vector<8x4xf32>
    %c8 = arith.constant 8 : index
    %c0_23 = arith.constant 0 : index
    %60 = vector.load %arg3[%c8, %c0_23] : memref<32x32xf32, #tpu.memory_space<vmem>>, vector<4x32xf32>
    %cst_24 = arith.constant dense<0.000000e+00> : vector<8x32xf32>
    %61 = tpu.matmul %59, %60, %cst_24 {dimension_numbers = #tpu.dot_dimension_numbers<[1], [0], [0], [1], [0, 0, 1, 1], [], []>} : vector<8x4xf32>, vector<4x32xf32>, vector<8x32xf32> -> vector<8x32xf32>
    %62 = arith.addf %44, %61 : vector<8x32xf32>
    %63 = vector.extract_strided_slice %7 {offsets = [0, 12], sizes = [8, 4], strides = [1, 1]} : vector<8x32xf32> to vector<8x4xf32>
    %64 = vector.extract_strided_slice %8 {offsets = [0, 12], sizes = [8, 4], strides = [1, 1]} : vector<8x32xf32> to vector<8x4xf32>
    %65 = vector.extract_strided_slice %9 {offsets = [0, 12], sizes = [8, 4], strides = [1, 1]} : vector<8x32xf32> to vector<8x4xf32>
    %cst_25 = arith.constant dense<0.000000e+00> : vector<8x8xf32>
    %66 = tpu.matmul %63, %64, %cst_25 {dimension_numbers = #tpu.dot_dimension_numbers<[1], [1], [0], [0], [0, 0, 1, 0], [], []>} : vector<8x4xf32>, vector<8x4xf32>, vector<8x8xf32> -> vector<8x8xf32>
    %cst_26 = arith.constant dense<0xFF800000> : vector<8xf32>
    %67 = vector.multi_reduction <maximumf>, %66, %cst_26 [1] : vector<8x8xf32> to vector<8xf32>
    %68 = vector.shape_cast %67 : vector<8xf32> to vector<8x1xf32>
    %69 = vector.broadcast %68 : vector<8x1xf32> to vector<8x8xf32>
    %70 = arith.subf %66, %69 : vector<8x8xf32>
    %71 = math.exp %70 : vector<8x8xf32>
    %cst_27 = arith.constant dense<0.000000e+00> : vector<8xf32>
    %72 = vector.multi_reduction <add>, %71, %cst_27 [1] : vector<8x8xf32> to vector<8xf32>
    %73 = vector.shape_cast %72 : vector<8xf32> to vector<8x1xf32>
    %74 = tpu.reciprocal %73 {approx = true} : vector<8x1xf32> -> vector<8x1xf32>
    %75 = vector.broadcast %74 : vector<8x1xf32> to vector<8x8xf32>
    %76 = arith.mulf %71, %75 : vector<8x8xf32>
    %cst_28 = arith.constant dense<0.000000e+00> : vector<8x4xf32>
    %77 = tpu.matmul %76, %65, %cst_28 {dimension_numbers = #tpu.dot_dimension_numbers<[1], [0], [0], [1], [0, 0, 1, 1], [], []>} : vector<8x8xf32>, vector<8x4xf32>, vector<8x4xf32> -> vector<8x4xf32>
    %c12 = arith.constant 12 : index
    %c0_29 = arith.constant 0 : index
    %78 = vector.load %arg3[%c12, %c0_29] : memref<32x32xf32, #tpu.memory_space<vmem>>, vector<4x32xf32>
    %cst_30 = arith.constant dense<0.000000e+00> : vector<8x32xf32>
    %79 = tpu.matmul %77, %78, %cst_30 {dimension_numbers = #tpu.dot_dimension_numbers<[1], [0], [0], [1], [0, 0, 1, 1], [], []>} : vector<8x4xf32>, vector<4x32xf32>, vector<8x32xf32> -> vector<8x32xf32>
    %80 = arith.addf %62, %79 : vector<8x32xf32>
    %81 = vector.extract_strided_slice %7 {offsets = [0, 16], sizes = [8, 4], strides = [1, 1]} : vector<8x32xf32> to vector<8x4xf32>
    %82 = vector.extract_strided_slice %8 {offsets = [0, 16], sizes = [8, 4], strides = [1, 1]} : vector<8x32xf32> to vector<8x4xf32>
    %83 = vector.extract_strided_slice %9 {offsets = [0, 16], sizes = [8, 4], strides = [1, 1]} : vector<8x32xf32> to vector<8x4xf32>
    %cst_31 = arith.constant dense<0.000000e+00> : vector<8x8xf32>
    %84 = tpu.matmul %81, %82, %cst_31 {dimension_numbers = #tpu.dot_dimension_numbers<[1], [1], [0], [0], [0, 0, 1, 0], [], []>} : vector<8x4xf32>, vector<8x4xf32>, vector<8x8xf32> -> vector<8x8xf32>
    %cst_32 = arith.constant dense<0xFF800000> : vector<8xf32>
    %85 = vector.multi_reduction <maximumf>, %84, %cst_32 [1] : vector<8x8xf32> to vector<8xf32>
    %86 = vector.shape_cast %85 : vector<8xf32> to vector<8x1xf32>
    %87 = vector.broadcast %86 : vector<8x1xf32> to vector<8x8xf32>
    %88 = arith.subf %84, %87 : vector<8x8xf32>
    %89 = math.exp %88 : vector<8x8xf32>
    %cst_33 = arith.constant dense<0.000000e+00> : vector<8xf32>
    %90 = vector.multi_reduction <add>, %89, %cst_33 [1] : vector<8x8xf32> to vector<8xf32>
    %91 = vector.shape_cast %90 : vector<8xf32> to vector<8x1xf32>
    %92 = tpu.reciprocal %91 {approx = true} : vector<8x1xf32> -> vector<8x1xf32>
    %93 = vector.broadcast %92 : vector<8x1xf32> to vector<8x8xf32>
    %94 = arith.mulf %89, %93 : vector<8x8xf32>
    %cst_34 = arith.constant dense<0.000000e+00> : vector<8x4xf32>
    %95 = tpu.matmul %94, %83, %cst_34 {dimension_numbers = #tpu.dot_dimension_numbers<[1], [0], [0], [1], [0, 0, 1, 1], [], []>} : vector<8x8xf32>, vector<8x4xf32>, vector<8x4xf32> -> vector<8x4xf32>
    %c16 = arith.constant 16 : index
    %c0_35 = arith.constant 0 : index
    %96 = vector.load %arg3[%c16, %c0_35] : memref<32x32xf32, #tpu.memory_space<vmem>>, vector<4x32xf32>
    %cst_36 = arith.constant dense<0.000000e+00> : vector<8x32xf32>
    %97 = tpu.matmul %95, %96, %cst_36 {dimension_numbers = #tpu.dot_dimension_numbers<[1], [0], [0], [1], [0, 0, 1, 1], [], []>} : vector<8x4xf32>, vector<4x32xf32>, vector<8x32xf32> -> vector<8x32xf32>
    %98 = arith.addf %80, %97 : vector<8x32xf32>
    %99 = vector.extract_strided_slice %7 {offsets = [0, 20], sizes = [8, 4], strides = [1, 1]} : vector<8x32xf32> to vector<8x4xf32>
    %100 = vector.extract_strided_slice %8 {offsets = [0, 20], sizes = [8, 4], strides = [1, 1]} : vector<8x32xf32> to vector<8x4xf32>
    %101 = vector.extract_strided_slice %9 {offsets = [0, 20], sizes = [8, 4], strides = [1, 1]} : vector<8x32xf32> to vector<8x4xf32>
    %cst_37 = arith.constant dense<0.000000e+00> : vector<8x8xf32>
    %102 = tpu.matmul %99, %100, %cst_37 {dimension_numbers = #tpu.dot_dimension_numbers<[1], [1], [0], [0], [0, 0, 1, 0], [], []>} : vector<8x4xf32>, vector<8x4xf32>, vector<8x8xf32> -> vector<8x8xf32>
    %cst_38 = arith.constant dense<0xFF800000> : vector<8xf32>
    %103 = vector.multi_reduction <maximumf>, %102, %cst_38 [1] : vector<8x8xf32> to vector<8xf32>
    %104 = vector.shape_cast %103 : vector<8xf32> to vector<8x1xf32>
    %105 = vector.broadcast %104 : vector<8x1xf32> to vector<8x8xf32>
    %106 = arith.subf %102, %105 : vector<8x8xf32>
    %107 = math.exp %106 : vector<8x8xf32>
    %cst_39 = arith.constant dense<0.000000e+00> : vector<8xf32>
    %108 = vector.multi_reduction <add>, %107, %cst_39 [1] : vector<8x8xf32> to vector<8xf32>
    %109 = vector.shape_cast %108 : vector<8xf32> to vector<8x1xf32>
    %110 = tpu.reciprocal %109 {approx = true} : vector<8x1xf32> -> vector<8x1xf32>
    %111 = vector.broadcast %110 : vector<8x1xf32> to vector<8x8xf32>
    %112 = arith.mulf %107, %111 : vector<8x8xf32>
    %cst_40 = arith.constant dense<0.000000e+00> : vector<8x4xf32>
    %113 = tpu.matmul %112, %101, %cst_40 {dimension_numbers = #tpu.dot_dimension_numbers<[1], [0], [0], [1], [0, 0, 1, 1], [], []>} : vector<8x8xf32>, vector<8x4xf32>, vector<8x4xf32> -> vector<8x4xf32>
    %c20 = arith.constant 20 : index
    %c0_41 = arith.constant 0 : index
    %114 = vector.load %arg3[%c20, %c0_41] : memref<32x32xf32, #tpu.memory_space<vmem>>, vector<4x32xf32>
    %cst_42 = arith.constant dense<0.000000e+00> : vector<8x32xf32>
    %115 = tpu.matmul %113, %114, %cst_42 {dimension_numbers = #tpu.dot_dimension_numbers<[1], [0], [0], [1], [0, 0, 1, 1], [], []>} : vector<8x4xf32>, vector<4x32xf32>, vector<8x32xf32> -> vector<8x32xf32>
    %116 = arith.addf %98, %115 : vector<8x32xf32>
    %117 = vector.extract_strided_slice %7 {offsets = [0, 24], sizes = [8, 4], strides = [1, 1]} : vector<8x32xf32> to vector<8x4xf32>
    %118 = vector.extract_strided_slice %8 {offsets = [0, 24], sizes = [8, 4], strides = [1, 1]} : vector<8x32xf32> to vector<8x4xf32>
    %119 = vector.extract_strided_slice %9 {offsets = [0, 24], sizes = [8, 4], strides = [1, 1]} : vector<8x32xf32> to vector<8x4xf32>
    %cst_43 = arith.constant dense<0.000000e+00> : vector<8x8xf32>
    %120 = tpu.matmul %117, %118, %cst_43 {dimension_numbers = #tpu.dot_dimension_numbers<[1], [1], [0], [0], [0, 0, 1, 0], [], []>} : vector<8x4xf32>, vector<8x4xf32>, vector<8x8xf32> -> vector<8x8xf32>
    %cst_44 = arith.constant dense<0xFF800000> : vector<8xf32>
    %121 = vector.multi_reduction <maximumf>, %120, %cst_44 [1] : vector<8x8xf32> to vector<8xf32>
    %122 = vector.shape_cast %121 : vector<8xf32> to vector<8x1xf32>
    %123 = vector.broadcast %122 : vector<8x1xf32> to vector<8x8xf32>
    %124 = arith.subf %120, %123 : vector<8x8xf32>
    %125 = math.exp %124 : vector<8x8xf32>
    %cst_45 = arith.constant dense<0.000000e+00> : vector<8xf32>
    %126 = vector.multi_reduction <add>, %125, %cst_45 [1] : vector<8x8xf32> to vector<8xf32>
    %127 = vector.shape_cast %126 : vector<8xf32> to vector<8x1xf32>
    %128 = tpu.reciprocal %127 {approx = true} : vector<8x1xf32> -> vector<8x1xf32>
    %129 = vector.broadcast %128 : vector<8x1xf32> to vector<8x8xf32>
    %130 = arith.mulf %125, %129 : vector<8x8xf32>
    %cst_46 = arith.constant dense<0.000000e+00> : vector<8x4xf32>
    %131 = tpu.matmul %130, %119, %cst_46 {dimension_numbers = #tpu.dot_dimension_numbers<[1], [0], [0], [1], [0, 0, 1, 1], [], []>} : vector<8x8xf32>, vector<8x4xf32>, vector<8x4xf32> -> vector<8x4xf32>
    %c24 = arith.constant 24 : index
    %c0_47 = arith.constant 0 : index
    %132 = vector.load %arg3[%c24, %c0_47] : memref<32x32xf32, #tpu.memory_space<vmem>>, vector<4x32xf32>
    %cst_48 = arith.constant dense<0.000000e+00> : vector<8x32xf32>
    %133 = tpu.matmul %131, %132, %cst_48 {dimension_numbers = #tpu.dot_dimension_numbers<[1], [0], [0], [1], [0, 0, 1, 1], [], []>} : vector<8x4xf32>, vector<4x32xf32>, vector<8x32xf32> -> vector<8x32xf32>
    %134 = arith.addf %116, %133 : vector<8x32xf32>
    %135 = vector.extract_strided_slice %7 {offsets = [0, 28], sizes = [8, 4], strides = [1, 1]} : vector<8x32xf32> to vector<8x4xf32>
    %136 = vector.extract_strided_slice %8 {offsets = [0, 28], sizes = [8, 4], strides = [1, 1]} : vector<8x32xf32> to vector<8x4xf32>
    %137 = vector.extract_strided_slice %9 {offsets = [0, 28], sizes = [8, 4], strides = [1, 1]} : vector<8x32xf32> to vector<8x4xf32>
    %cst_49 = arith.constant dense<0.000000e+00> : vector<8x8xf32>
    %138 = tpu.matmul %135, %136, %cst_49 {dimension_numbers = #tpu.dot_dimension_numbers<[1], [1], [0], [0], [0, 0, 1, 0], [], []>} : vector<8x4xf32>, vector<8x4xf32>, vector<8x8xf32> -> vector<8x8xf32>
    %cst_50 = arith.constant dense<0xFF800000> : vector<8xf32>
    %139 = vector.multi_reduction <maximumf>, %138, %cst_50 [1] : vector<8x8xf32> to vector<8xf32>
    %140 = vector.shape_cast %139 : vector<8xf32> to vector<8x1xf32>
    %141 = vector.broadcast %140 : vector<8x1xf32> to vector<8x8xf32>
    %142 = arith.subf %138, %141 : vector<8x8xf32>
    %143 = math.exp %142 : vector<8x8xf32>
    %cst_51 = arith.constant dense<0.000000e+00> : vector<8xf32>
    %144 = vector.multi_reduction <add>, %143, %cst_51 [1] : vector<8x8xf32> to vector<8xf32>
    %145 = vector.shape_cast %144 : vector<8xf32> to vector<8x1xf32>
    %146 = tpu.reciprocal %145 {approx = true} : vector<8x1xf32> -> vector<8x1xf32>
    %147 = vector.broadcast %146 : vector<8x1xf32> to vector<8x8xf32>
    %148 = arith.mulf %143, %147 : vector<8x8xf32>
    %cst_52 = arith.constant dense<0.000000e+00> : vector<8x4xf32>
    %149 = tpu.matmul %148, %137, %cst_52 {dimension_numbers = #tpu.dot_dimension_numbers<[1], [0], [0], [1], [0, 0, 1, 1], [], []>} : vector<8x8xf32>, vector<8x4xf32>, vector<8x4xf32> -> vector<8x4xf32>
    %c28 = arith.constant 28 : index
    %c0_53 = arith.constant 0 : index
    %150 = vector.load %arg3[%c28, %c0_53] : memref<32x32xf32, #tpu.memory_space<vmem>>, vector<4x32xf32>
    %cst_54 = arith.constant dense<0.000000e+00> : vector<8x32xf32>
    %151 = tpu.matmul %149, %150, %cst_54 {dimension_numbers = #tpu.dot_dimension_numbers<[1], [0], [0], [1], [0, 0, 1, 1], [], []>} : vector<8x4xf32>, vector<4x32xf32>, vector<8x32xf32> -> vector<8x32xf32>
    %152 = arith.addf %134, %151 : vector<8x32xf32>
    %153 = arith.addf %1, %152 : vector<8x32xf32>
    %c0_55 = arith.constant 0 : index
    %c128 = arith.constant 128 : index
    %154 = vector.load %arg6[%c0_55, %c128] : memref<1x1024xf32, #tpu.memory_space<vmem>>, vector<1x32xf32>
    %155 = vector.broadcast %154 : vector<1x32xf32> to vector<8x32xf32>
    %156 = arith.addf %153, %155 : vector<8x32xf32>
    %cst_56 = arith.constant dense<0.000000e+00> : vector<8xf32>
    %157 = vector.multi_reduction <add>, %156, %cst_56 [1] : vector<8x32xf32> to vector<8xf32>
    %158 = vector.shape_cast %157 : vector<8xf32> to vector<8x1xf32>
    %cst_57 = arith.constant 3.200000e+01 : f32
    %159 = vector.broadcast %cst_57 : f32 to vector<8x1xf32>
    %160 = arith.divf %158, %159 : vector<8x1xf32>
    %161 = vector.broadcast %160 : vector<8x1xf32> to vector<8x32xf32>
    %162 = arith.subf %156, %161 : vector<8x32xf32>
    %163 = arith.mulf %162, %162 : vector<8x32xf32>
    %cst_58 = arith.constant dense<0.000000e+00> : vector<8xf32>
    %164 = vector.multi_reduction <add>, %163, %cst_58 [1] : vector<8x32xf32> to vector<8xf32>
    %165 = vector.shape_cast %164 : vector<8xf32> to vector<8x1xf32>
    %cst_59 = arith.constant 3.200000e+01 : f32
    %166 = vector.broadcast %cst_59 : f32 to vector<8x1xf32>
    %167 = arith.divf %165, %166 : vector<8x1xf32>
    %168 = vector.broadcast %160 : vector<8x1xf32> to vector<8x32xf32>
    %169 = arith.subf %156, %168 : vector<8x32xf32>
    %cst_60 = arith.constant 9.99999974E-6 : f32
    %170 = vector.broadcast %cst_60 : f32 to vector<8x1xf32>
    %171 = arith.addf %167, %170 : vector<8x1xf32>
    %172 = math.rsqrt %171 : vector<8x1xf32>
    %173 = vector.broadcast %172 : vector<8x1xf32> to vector<8x32xf32>
    %174 = arith.mulf %169, %173 : vector<8x32xf32>
    %c0_61 = arith.constant 0 : index
    %c256 = arith.constant 256 : index
    %175 = vector.load %arg6[%c0_61, %c256] : memref<1x1024xf32, #tpu.memory_space<vmem>>, vector<1x32xf32>
    %176 = vector.broadcast %175 : vector<1x32xf32> to vector<8x32xf32>
    %177 = arith.mulf %174, %176 : vector<8x32xf32>
    %c0_62 = arith.constant 0 : index
    %c384 = arith.constant 384 : index
    %178 = vector.load %arg6[%c0_62, %c384] : memref<1x1024xf32, #tpu.memory_space<vmem>>, vector<1x32xf32>
    %179 = vector.broadcast %178 : vector<1x32xf32> to vector<8x32xf32>
    %180 = arith.addf %177, %179 : vector<8x32xf32>
    %c0_63 = arith.constant 0 : index
    %c0_64 = arith.constant 0 : index
    %181 = vector.load %arg4[%c0_63, %c0_64] : memref<32x64xf32, #tpu.memory_space<vmem>>, vector<32x64xf32>
    %cst_65 = arith.constant dense<0.000000e+00> : vector<8x64xf32>
    %182 = tpu.matmul %180, %181, %cst_65 {dimension_numbers = #tpu.dot_dimension_numbers<[1], [0], [0], [1], [0, 0, 1, 1], [], []>} : vector<8x32xf32>, vector<32x64xf32>, vector<8x64xf32> -> vector<8x64xf32>
    %c0_66 = arith.constant 0 : index
    %c512 = arith.constant 512 : index
    %183 = vector.load %arg6[%c0_66, %c512] : memref<1x1024xf32, #tpu.memory_space<vmem>>, vector<1x64xf32>
    %184 = vector.broadcast %183 : vector<1x64xf32> to vector<8x64xf32>
    %185 = arith.addf %182, %184 : vector<8x64xf32>
    %cst_67 = arith.constant 5.000000e-01 : f32
    %186 = vector.broadcast %cst_67 : f32 to vector<8x64xf32>
    %187 = arith.mulf %186, %185 : vector<8x64xf32>
    %cst_68 = arith.constant 4.471500e-02 : f32
    %188 = vector.broadcast %cst_68 : f32 to vector<8x64xf32>
    %189 = arith.mulf %188, %185 : vector<8x64xf32>
    %190 = arith.mulf %189, %185 : vector<8x64xf32>
    %191 = arith.mulf %190, %185 : vector<8x64xf32>
    %192 = arith.addf %185, %191 : vector<8x64xf32>
    %cst_69 = arith.constant 0.797884583 : f32
    %193 = vector.broadcast %cst_69 : f32 to vector<8x64xf32>
    %194 = arith.mulf %193, %192 : vector<8x64xf32>
    %195 = math.tanh %194 : vector<8x64xf32>
    %cst_70 = arith.constant 1.000000e+00 : f32
    %196 = vector.broadcast %cst_70 : f32 to vector<8x64xf32>
    %197 = arith.addf %196, %195 : vector<8x64xf32>
    %198 = arith.mulf %187, %197 : vector<8x64xf32>
    %c0_71 = arith.constant 0 : index
    %c0_72 = arith.constant 0 : index
    %199 = vector.load %arg5[%c0_71, %c0_72] : memref<64x32xf32, #tpu.memory_space<vmem>>, vector<64x32xf32>
    %cst_73 = arith.constant dense<0.000000e+00> : vector<8x32xf32>
    %200 = tpu.matmul %198, %199, %cst_73 {dimension_numbers = #tpu.dot_dimension_numbers<[1], [0], [0], [1], [0, 0, 1, 1], [], []>} : vector<8x64xf32>, vector<64x32xf32>, vector<8x32xf32> -> vector<8x32xf32>
    %c0_74 = arith.constant 0 : index
    %c640 = arith.constant 640 : index
    %201 = vector.load %arg6[%c0_74, %c640] : memref<1x1024xf32, #tpu.memory_space<vmem>>, vector<1x32xf32>
    %202 = vector.broadcast %201 : vector<1x32xf32> to vector<8x32xf32>
    %203 = arith.addf %200, %202 : vector<8x32xf32>
    %204 = arith.addf %180, %203 : vector<8x32xf32>
    %cst_75 = arith.constant dense<0.000000e+00> : vector<8xf32>
    %205 = vector.multi_reduction <add>, %204, %cst_75 [1] : vector<8x32xf32> to vector<8xf32>
    %206 = vector.shape_cast %205 : vector<8xf32> to vector<8x1xf32>
    %cst_76 = arith.constant 3.200000e+01 : f32
    %207 = vector.broadcast %cst_76 : f32 to vector<8x1xf32>
    %208 = arith.divf %206, %207 : vector<8x1xf32>
    %209 = vector.broadcast %208 : vector<8x1xf32> to vector<8x32xf32>
    %210 = arith.subf %204, %209 : vector<8x32xf32>
    %211 = arith.mulf %210, %210 : vector<8x32xf32>
    %cst_77 = arith.constant dense<0.000000e+00> : vector<8xf32>
    %212 = vector.multi_reduction <add>, %211, %cst_77 [1] : vector<8x32xf32> to vector<8xf32>
    %213 = vector.shape_cast %212 : vector<8xf32> to vector<8x1xf32>
    %cst_78 = arith.constant 3.200000e+01 : f32
    %214 = vector.broadcast %cst_78 : f32 to vector<8x1xf32>
    %215 = arith.divf %213, %214 : vector<8x1xf32>
    %216 = vector.broadcast %208 : vector<8x1xf32> to vector<8x32xf32>
    %217 = arith.subf %204, %216 : vector<8x32xf32>
    %cst_79 = arith.constant 9.99999974E-6 : f32
    %218 = vector.broadcast %cst_79 : f32 to vector<8x1xf32>
    %219 = arith.addf %215, %218 : vector<8x1xf32>
    %220 = math.rsqrt %219 : vector<8x1xf32>
    %221 = vector.broadcast %220 : vector<8x1xf32> to vector<8x32xf32>
    %222 = arith.mulf %217, %221 : vector<8x32xf32>
    %c0_80 = arith.constant 0 : index
    %c768 = arith.constant 768 : index
    %223 = vector.load %arg6[%c0_80, %c768] : memref<1x1024xf32, #tpu.memory_space<vmem>>, vector<1x32xf32>
    %224 = vector.broadcast %223 : vector<1x32xf32> to vector<8x32xf32>
    %225 = arith.mulf %222, %224 : vector<8x32xf32>
    %c0_81 = arith.constant 0 : index
    %c896 = arith.constant 896 : index
    %226 = vector.load %arg6[%c0_81, %c896] : memref<1x1024xf32, #tpu.memory_space<vmem>>, vector<1x32xf32>
    %227 = vector.broadcast %226 : vector<1x32xf32> to vector<8x32xf32>
    %228 = arith.addf %225, %227 : vector<8x32xf32>
    %c0_82 = arith.constant 0 : index
    %c0_83 = arith.constant 0 : index
    %c0_84 = arith.constant 0 : index
    %229 = vector.load %arg7[%c0_82, %c0_83, %c0_84] : memref<1x8x32xf32, #tpu.memory_space<vmem>>, vector<1x8x32xf32>
    %230 = vector.shape_cast %229 : vector<1x8x32xf32> to vector<8x32xf32>
    %231 = vector.shape_cast %228 : vector<8x32xf32> to vector<1x8x32xf32>
    tpu.vector_store %arg7[%c0_82, %c0_83, %c0_84], %231 {strides = array<i32>} : memref<1x8x32xf32, #tpu.memory_space<vmem>>, vector<1x8x32xf32>,
    return
  }
  func.func @transform_0(%arg0: i32) -> (i32, i32, i32) {
    %c0_i32 = arith.constant 0 : i32
    %c0_i32_0 = arith.constant 0 : i32
    %c0_i32_1 = arith.constant 0 : i32
    return %arg0, %c0_i32, %c0_i32_0 : i32, i32, i32
  }
  func.func @transform_1(%arg0: i32) -> (i32, i32) {
    %c0_i32 = arith.constant 0 : i32
    %c0_i32_0 = arith.constant 0 : i32
    %c0_i32_1 = arith.constant 0 : i32
    return %c0_i32, %c0_i32_0 : i32, i32
  }
  func.func @transform_2(%arg0: i32) -> (i32, i32) {
    %c0_i32 = arith.constant 0 : i32
    %c0_i32_0 = arith.constant 0 : i32
    %c0_i32_1 = arith.constant 0 : i32
    return %c0_i32, %c0_i32_0 : i32, i32
  }
  func.func @transform_3(%arg0: i32) -> (i32, i32) {
    %c0_i32 = arith.constant 0 : i32
    %c0_i32_0 = arith.constant 0 : i32
    %c0_i32_1 = arith.constant 0 : i32
    return %c0_i32, %c0_i32_0 : i32, i32
  }
  func.func @transform_4(%arg0: i32) -> (i32, i32) {
    %c0_i32 = arith.constant 0 : i32
    %c0_i32_0 = arith.constant 0 : i32
    %c0_i32_1 = arith.constant 0 : i32
    return %c0_i32, %c0_i32_0 : i32, i32
  }
  func.func @transform_5(%arg0: i32) -> (i32, i32) {
    %c0_i32 = arith.constant 0 : i32
    %c0_i32_0 = arith.constant 0 : i32
    %c0_i32_1 = arith.constant 0 : i32
    return %c0_i32, %c0_i32_0 : i32, i32
  }
  func.func @transform_6(%arg0: i32) -> (i32, i32, i32) {
    %c0_i32 = arith.constant 0 : i32
    %c0_i32_0 = arith.constant 0 : i32
    %c0_i32_1 = arith.constant 0 : i32
    return %arg0, %c0_i32, %c0_i32_0 : i32, i32, i32
  }
}

</mosaic_0001>

<llo_original>
// kernel: fwd.1
$region0: #{fwd.1}
  #allocation0 [shape = 'u32[]', space=smem, size = 0x4, offset = 0x4, fixed_abs, tag = 'smem constant byte address 0x4 - core index']
  #allocation1 [shape = 'u32[72,128]{1,0:T(1,128)}', space=vmem, size = 0x9000, scoped, tag = 'internal scratch']
  %s0 = inlined_call_operand.hbm [shape: f32[2,8,32], index: 0, kind: input, shape index: {}]
  %s1 = inlined_call_operand.vmem [shape: f32[32,96], index: 1, kind: input, shape index: {}]
  %s2 = inlined_call_operand.vmem [shape: f32[32,32], index: 2, kind: input, shape index: {}]
  %s3 = inlined_call_operand.vmem [shape: f32[32,64], index: 3, kind: input, shape index: {}]
  %s4 = inlined_call_operand.vmem [shape: f32[64,32], index: 4, kind: input, shape index: {}]
  %s5 = inlined_call_operand.hbm [shape: f32[1,1024], index: 5, kind: input, shape index: {}]
  %s6 = inlined_call_operand.hbm [shape: f32[2,8,32], index: 6, kind: output, shape index: {}]
  %s7 = sld [smem:[#allocation0]]
  $region65: #{fwd.1} parent=0
    _
  %s9 = ssub.s32 1, %s7
  %s10 = scalar_select 0, %s9, %s7
  $region1: #{fwd.1} parent=0
    #allocation2 [shape = 'u8[8192]{0}', space=vmem, size = 0x2000, scoped, tag = 'input window, operand 0']
    #allocation3 [shape = 's32[2]{0}', space=sflag, size = 0x8, scoped, tag = 'scoped memory for fwd.1']
    #allocation4 [shape = 's32[2]{0}', space=sflag, size = 0x8, scoped, tag = 'scoped memory for fwd.1']
    #allocation5 [shape = 'u8[4096]{0}', space=vmem, size = 0x1000, scoped, tag = 'input window, operand 5, single buffered']
    #allocation6 [shape = 's32[1]{0}', space=sflag, size = 0x4, scoped, tag = 'scoped memory for fwd.1']
    #allocation7 [shape = 'u8[8192]{0}', space=vmem, size = 0x2000, scoped, tag = 'output window, operand 0']
    %11 = vsyncpa [#allocation3], 0
    %s12 = scalar_lea.sflag [#allocation3], 1
    %13 = vsyncpa %s12, 0
    %14 = vsyncpa [#allocation6], 0
    %15 = vsyncpa [#allocation4], 0
    %s16 = scalar_lea.sflag [#allocation4], 1
    %17 = vsyncpa %s16, 0
    loop: start=0, step=1, limit=4
    $region2: #{fwd.1} parent=1 // loop_pre_header
      _
    $region3: #{fwd.1} parent=1 // loop_header
      %s19 = sphi 0, %s23
      %p20 = scmp.ge.s32.totalorder %s19, 4
      %s29 = sphi 0, %s31
      %s32 = sphi 0, %s29
      %s33 = sphi 0, %s32
      %s49 = sphi 0, %s33
      %s53 = sphi 0, %s53
      %s55 = sphi 0, %s53
      %s56 = sphi 0, %s55
      %s70 = sphi 0, %s56
      %s74 = sphi 0, %s74
      %s76 = sphi 0, %s74
      %s77 = sphi 0, %s76
      %s91 = sphi 0, %s77
      %s95 = sphi 0, %s95
      %s97 = sphi 0, %s95
      %s98 = sphi 0, %s97
      %s112 = sphi 0, %s98
      %s116 = sphi 0, %s116
      %s118 = sphi 0, %s116
      %s119 = sphi 0, %s118
      %s133 = sphi 0, %s119
      %s137 = sphi 0, %s137
      %s139 = sphi 0, %s137
      %s140 = sphi 0, %s139
      %s154 = sphi 0, %s140
      %s160 = sphi 0, %s162
      %s163 = sphi 0, %s160
      %s164 = sphi 0, %s163
      %s180 = sphi 0, %s164
    $region4: #{fwd.1} parent=1 // loop_header_branch
      %22 = sbr.rel (%p20) target = $region8
    $region5: #{fwd.1} parent=1 // loop_body
      %s24 = ssub.s32 %s19, 1
      %s25 = ssub.s32 %s19, 2
      %s26 = sadd.s32 %s19, 1
      %s27 = ssub.s32 %s19, %s26
      %p28 = scmp.eq.s32.totalorder %s27, 0
      %s30 = sadd.s32 %s29, 1
      %s31 = scalar_select %p28, %s29, %s30
      %p34 = pneg %p28
      %p35 = scmp.eq.s32.totalorder %s19, 1
      %p36 = por %p34, %p35
      %p37 = scmp.ne.s32.totalorder %s29, %s32
      %p38 = scmp.eq.s32.totalorder %s19, 0
      %p39 = por %p37, %p38
      %p40 = scmp.ne.s32.totalorder %s29, %s32
      %p41 = scmp.eq.s32.totalorder %s24, 1
      %p42 = por %p40, %p41
      %p43 = scmp.ne.s32.totalorder %s32, %s33
      %p44 = scmp.eq.s32.totalorder %s24, 0
      %p45 = por %p43, %p44
      %p46 = scmp.ne.s32.totalorder %s32, %s33
      %p47 = scmp.eq.s32.totalorder %s25, 1
      %p48 = por %p46, %p47
      %p50 = scmp.ne.s32.totalorder %s33, %s49
      %p51 = scmp.eq.s32.totalorder %s25, 0
      %p52 = por %p50, %p51
      %s54 = sadd.s32 %s53, 1
      %p57 = scmp.eq.s32.totalorder %s19, 1
      %p58 = scmp.ne.s32.totalorder %s53, %s55
      %p59 = scmp.eq.s32.totalorder %s19, 0
      %p60 = por %p58, %p59
      %p61 = scmp.ne.s32.totalorder %s53, %s55
      %p62 = scmp.eq.s32.totalorder %s24, 1
      %p63 = por %p61, %p62
      %p64 = scmp.ne.s32.totalorder %s55, %s56
      %p65 = scmp.eq.s32.totalorder %s24, 0
      %p66 = por %p64, %p65
      %p67 = scmp.ne.s32.totalorder %s55, %s56
      %p68 = scmp.eq.s32.totalorder %s25, 1
      %p69 = por %p67, %p68
      %p71 = scmp.ne.s32.totalorder %s56, %s70
      %p72 = scmp.eq.s32.totalorder %s25, 0
      %p73 = por %p71, %p72
      %s75 = sadd.s32 %s74, 1
      %p78 = scmp.eq.s32.totalorder %s19, 1
      %p79 = scmp.ne.s32.totalorder %s74, %s76
      %p80 = scmp.eq.s32.totalorder %s19, 0
      %p81 = por %p79, %p80
      %p82 = scmp.ne.s32.totalorder %s74, %s76
      %p83 = scmp.eq.s32.totalorder %s24, 1
      %p84 = por %p82, %p83
      %p85 = scmp.ne.s32.totalorder %s76, %s77
      %p86 = scmp.eq.s32.totalorder %s24, 0
      %p87 = por %p85, %p86
      %p88 = scmp.ne.s32.totalorder %s76, %s77
      %p89 = scmp.eq.s32.totalorder %s25, 1
      %p90 = por %p88, %p89
      %p92 = scmp.ne.s32.totalorder %s77, %s91
      %p93 = scmp.eq.s32.totalorder %s25, 0
      %p94 = por %p92, %p93
      %s96 = sadd.s32 %s95, 1
      %p99 = scmp.eq.s32.totalorder %s19, 1
      %p100 = scmp.ne.s32.totalorder %s95, %s97
      %p101 = scmp.eq.s32.totalorder %s19, 0
      %p102 = por %p100, %p101
      %p103 = scmp.ne.s32.totalorder %s95, %s97
      %p104 = scmp.eq.s32.totalorder %s24, 1
      %p105 = por %p103, %p104
      %p106 = scmp.ne.s32.totalorder %s97, %s98
      %p107 = scmp.eq.s32.totalorder %s24, 0
      %p108 = por %p106, %p107
      %p109 = scmp.ne.s32.totalorder %s97, %s98
      %p110 = scmp.eq.s32.totalorder %s25, 1
      %p111 = por %p109, %p110
      %p113 = scmp.ne.s32.totalorder %s98, %s112
      %p114 = scmp.eq.s32.totalorder %s25, 0
      %p115 = por %p113, %p114
      %s117 = sadd.s32 %s116, 1
      %p120 = scmp.eq.s32.totalorder %s19, 1
      %p121 = scmp.ne.s32.totalorder %s116, %s118
      %p122 = scmp.eq.s32.totalorder %s19, 0
      %p123 = por %p121, %p122
      %p124 = scmp.ne.s32.totalorder %s116, %s118
      %p125 = scmp.eq.s32.totalorder %s24, 1
      %p126 = por %p124, %p125
      %p127 = scmp.ne.s32.totalorder %s118, %s119
      %p128 = scmp.eq.s32.totalorder %s24, 0
      %p129 = por %p127, %p128
      %p130 = scmp.ne.s32.totalorder %s118, %s119
      %p131 = scmp.eq.s32.totalorder %s25, 1
      %p132 = por %p130, %p131
      %p134 = scmp.ne.s32.totalorder %s119, %s133
      %p135 = scmp.eq.s32.totalorder %s25, 0
      %p136 = por %p134, %p135
      %s138 = sadd.s32 %s137, 1
      %p141 = scmp.eq.s32.totalorder %s19, 1
      %p142 = scmp.ne.s32.totalorder %s137, %s139
      %p143 = scmp.eq.s32.totalorder %s19, 0
      %p144 = por %p142, %p143
      %p145 = scmp.ne.s32.totalorder %s137, %s139
      %p146 = scmp.eq.s32.totalorder %s24, 1
      %p147 = por %p145, %p146
      %p148 = scmp.ne.s32.totalorder %s139, %s140
      %p149 = scmp.eq.s32.totalorder %s24, 0
      %p150 = por %p148, %p149
      %p151 = scmp.ne.s32.totalorder %s139, %s140
      %p152 = scmp.eq.s32.totalorder %s25, 1
      %p153 = por %p151, %p152
      %p155 = scmp.ne.s32.totalorder %s140, %s154
      %p156 = scmp.eq.s32.totalorder %s25, 0
      %p157 = por %p155, %p156
      %s158 = ssub.s32 %s19, %s26
      %p159 = scmp.eq.s32.totalorder %s158, 0
      %s161 = sadd.s32 %s160, 1
      %s162 = scalar_select %p159, %s160, %s161
      %p165 = pneg %p159
      %p166 = scmp.eq.s32.totalorder %s19, 1
      %p167 = por %p165, %p166
      %p168 = scmp.ne.s32.totalorder %s160, %s163
      %p169 = scmp.eq.s32.totalorder %s19, 0
      %p170 = por %p168, %p169
      %p171 = scmp.ne.s32.totalorder %s160, %s163
      %p172 = scmp.eq.s32.totalorder %s24, 1
      %p173 = por %p171, %p172
      %p174 = scmp.ne.s32.totalorder %s163, %s164
      %p175 = scmp.eq.s32.totalorder %s24, 0
      %p176 = por %p174, %p175
      %p177 = scmp.ne.s32.totalorder %s163, %s164
      %p178 = scmp.eq.s32.totalorder %s25, 1
      %p179 = por %p177, %p178
      %p181 = scmp.ne.s32.totalorder %s164, %s180
      %p182 = scmp.eq.s32.totalorder %s25, 0
      %p183 = por %p181, %p182
      %p184 = scmp.le.s32.totalorder 1, %s19
      %p185 = scmp.lt.s32.totalorder %s19, 3
      %p186 = pnand %p184, %p185
      %p187 = pneg %p186
      // Predicated region
      $region9: #{fwd.1} parent=5 // pred_check
        _
      $region10: #{fwd.1} parent=5 // pred_check_branch
        %189 = sbr.rel (%p186) target = $region12
      $region11: #{fwd.1} parent=5 // pred_region
        %s190 = ssub.s32 %s19, 1
        // Predicated region
        $region13: #{fwd.1} parent=11 // pred_check
          %p191 = pneg %p66
        $region14: #{fwd.1} parent=11 // pred_check_branch
          %193 = sbr.rel (%p191) target = $region16
        $region15: #{fwd.1} parent=11 // pred_region
          _
        $region16: #{fwd.1} parent=11 // pred_fallthru
          _
        // Predicated region
        $region17: #{fwd.1} parent=11 // pred_check
          %p194 = pneg %p87
        $region18: #{fwd.1} parent=11 // pred_check_branch
          %196 = sbr.rel (%p194) target = $region20
        $region19: #{fwd.1} parent=11 // pred_region
          _
        $region20: #{fwd.1} parent=11 // pred_fallthru
          _
        // Predicated region
        $region21: #{fwd.1} parent=11 // pred_check
          %p197 = pneg %p108
        $region22: #{fwd.1} parent=11 // pred_check_branch
          %199 = sbr.rel (%p197) target = $region24
        $region23: #{fwd.1} parent=11 // pred_region
          _
        $region24: #{fwd.1} parent=11 // pred_fallthru
          _
        // Predicated region
        $region25: #{fwd.1} parent=11 // pred_check
          %p200 = pneg %p129
        $region26: #{fwd.1} parent=11 // pred_check_branch
          %202 = sbr.rel (%p200) target = $region28
        $region27: #{fwd.1} parent=11 // pred_region
          _
        $region28: #{fwd.1} parent=11 // pred_fallthru
          _
        // Predicated region
        $region29: #{fwd.1} parent=11 // pred_check
          %p203 = pneg %p150
        $region30: #{fwd.1} parent=11 // pred_check_branch
          %205 = sbr.rel (%p203) target = $region32
        $region31: #{fwd.1} parent=11 // pred_region
          %207 = vsyncadd [#allocation6], 0
          %s209 = sshll.u32 %s5, 4
          %s210 = int_to_ptr.hbm [resolvable:$true] %s209
          %s211 = sshll.u32 [#allocation5], 4
          %s212 = int_to_ptr.vmem [resolvable:$true] %s211
          %214 = dma.hbm_to_vmem [thread:$0]  %s210, 128, %s212, [#allocation6]
        $region32: #{fwd.1} parent=11 // pred_fallthru
          _
      $region12: #{fwd.1} parent=5 // pred_fallthru
        _
      %p215 = scmp.lt.s32.totalorder %s19, 2
      // Predicated region
      $region33: #{fwd.1} parent=5 // pred_check
        %p216 = pneg %p215
      $region34: #{fwd.1} parent=5 // pred_check_branch
        %218 = sbr.rel (%p216) target = $region36
      $region35: #{fwd.1} parent=5 // pred_region
        // Predicated region
        $region37: #{fwd.1} parent=35 // pred_check
          %p219 = pneg %p39
        $region38: #{fwd.1} parent=35 // pred_check_branch
          %221 = sbr.rel (%p219) target = $region40
        $region39: #{fwd.1} parent=35 // pred_region
          %s222 = sand.u32 %s29, 1
          %s223 = scalar_lea.sflag [#allocation3], %s222
          %s224 = sand.u32 %s29, 1
          %s225 = smul.addr %s224, 8
          %s226 = scalar_lea.vmem [#allocation2], %s225
          %228 = vsyncadd %s223, 0
          %s229 = smul.addr %s19, 8
          %s230 = scalar_lea.hbm %s0, %s229
          %s232 = sshll.u32 %s230, 4
          %s233 = int_to_ptr.hbm [resolvable:$true] %s232
          %s234 = sshll.u32 %s226, 4
          %s235 = int_to_ptr.vmem [resolvable:$true] %s234
          %237 = dma.hbm_to_vmem [thread:$0]  %s233, 128, %s235, %s223
        $region40: #{fwd.1} parent=35 // pred_fallthru
          _
      $region36: #{fwd.1} parent=5 // pred_fallthru
        _
      %p238 = scmp.le.s32.totalorder 1, %s19
      %p239 = scmp.lt.s32.totalorder %s19, 3
      %p240 = pnand %p238, %p239
      %p241 = pneg %p240
      // Predicated region
      $region41: #{fwd.1} parent=5 // pred_check
        _
      $region42: #{fwd.1} parent=5 // pred_check_branch
        %243 = sbr.rel (%p240) target = $region44
      $region43: #{fwd.1} parent=5 // pred_region
        %s244 = ssub.s32 %s19, 1
        %s245 = sand.u32 %s32, 1
        %s246 = scalar_lea.sflag [#allocation3], %s245
        %s247 = sand.u32 %s32, 1
        %s248 = smul.addr %s247, 8
        %s249 = scalar_lea.vmem [#allocation2], %s248
        // Predicated region
        $region45: #{fwd.1} parent=43 // pred_check
          %p250 = pneg %p45
        $region46: #{fwd.1} parent=43 // pred_check_branch
          %252 = sbr.rel (%p250) target = $region48
        $region47: #{fwd.1} parent=43 // pred_region
          %254 = dma.done %s246, 128
        $region48: #{fwd.1} parent=43 // pred_fallthru
          _
        // Predicated region
        $region49: #{fwd.1} parent=43 // pred_check
          %p255 = pneg %p150
        $region50: #{fwd.1} parent=43 // pred_check_branch
          %257 = sbr.rel (%p255) target = $region52
        $region51: #{fwd.1} parent=43 // pred_region
          %259 = dma.done [#allocation6], 128
        $region52: #{fwd.1} parent=43 // pred_fallthru
          _
        %s260 = sand.u32 %s32, 1
        %s261 = scalar_lea.sflag [#allocation3], %s260
        %s262 = sand.u32 %s32, 1
        %s263 = smul.addr %s262, 8
        %s264 = scalar_lea.vmem [#allocation2], %s263
        %p265 = pneg %p45
        %p266 = pneg %p42
        %p267 = pneg %p66
        %p268 = pneg %p63
        %p269 = pneg %p87
        %p270 = pneg %p84
        %p271 = pneg %p108
        %p272 = pneg %p105
        %p273 = pneg %p129
        %p274 = pneg %p126
        %p275 = pneg %p150
        %p276 = pneg %p147
        %p277 = pneg %p176
        %p278 = pneg %p173
        %s279 = sand.u32 %s163, 1
        %s280 = scalar_lea.sflag [#allocation4], %s279
        %s281 = sand.u32 %s163, 1
        %s282 = smul.addr %s281, 8
        %s283 = scalar_lea.vmem [#allocation7], %s282
        %v284 = vld [vmem:[%s249] sm:$0xff]
        %v285 = vld [vmem:[%s1] sm:$0xff]
        %v286 = vld [vmem:[%s1 + $0x8] sm:$0xff]
        %v287 = vld [vmem:[%s1 + $0x10] sm:$0xff]
        %v288 = vld [vmem:[%s1 + $0x18] sm:$0xff]
        %v289 = vld [vmem:[#allocation5] sm:$0x1]
        %v291 = vperm.slane %v289, 0
        %vm293 = vcmask 261120
        %v295 = vsel %vm293, %v284, 0
        %297 = vmatpush.msra.mxu0 0.0
        %298 = vmatpush.msra.mxu0 0.0
        %299 = vmatpush.msra.mxu0 0.0
        %300 = vmatpush.msra.mxu0 0.0
        %301 = vmatpush.msra.mxu0 0.0
        %302 = vmatpush.msra.mxu0 0.0
        %303 = vmatpush.msra.mxu0 0.0
        %304 = vmatpush.msra.mxu0 0.0
        %305 = vmatpush.msra.mxu0 0.0
        %306 = vmatpush.msra.mxu0 0.0
        %307 = vmatpush.msra.mxu0 0.0
        %308 = vmatpush.msra.mxu0 0.0
        %309 = vmatpush.msra.mxu0 %v288
        %310 = vmatpush.msra.mxu0 %v287
        %311 = vmatpush.msra.mxu0 %v286
        %312 = vmatpush.msra.mxu0 %v285
        %313 = vmatmul.f32.gmra.mxu0 %v295
        %v314 = vpop.f32.mrf.mxu0
        %v315 = vadd.f32 %v291, %v314
        %316 = vdwg.mxu0
        %318 = vrot.lane.b32.xlu0 %v315, 96
        %v319 = vpop.permute.xlu0 %318
        %vm320 = vcmask 31744
        %v321 = vsel %vm320, %v315, 0
        %v323 = vsel %vm320, %v319, 0
        %325 = vmatpush.xpose.msra.mxu0 0.0
        %326 = vmatpush.xpose.msra.mxu0 0.0
        %327 = vmatpush.xpose.msra.mxu0 0.0
        %328 = vmatpush.xpose.msra.mxu0 0.0
        %329 = vmatpush.xpose.msra.mxu0 0.0
        %330 = vmatpush.xpose.msra.mxu0 0.0
        %331 = vmatpush.xpose.msra.mxu0 0.0
        %332 = vmatpush.xpose.msra.mxu0 0.0
        %333 = vmatpush.xpose.msra.mxu0 0.0
        %334 = vmatpush.xpose.msra.mxu0 0.0
        %335 = vmatpush.xpose.msra.mxu0 0.0
        %336 = vmatpush.xpose.msra.mxu0 0.0
        %337 = vmatpush.xpose.msra.mxu0 0.0
        %338 = vmatpush.xpose.msra.mxu0 0.0
        %339 = vmatpush.xpose.msra.mxu0 0.0
        %340 = vmatpush.xpose.msra.mxu0 %v323
        %341 = vmatmul.f32.gmra.mxu0 %v321
        %v342 = vpop.f32.mrf.mxu0
        %v343 = vadd.f32 0.0, %v342
        %344 = vdwg.mxu0
        %vm345 = vcmask 64512
        %v346 = vsel %vm345, %v343, -inf
        %347 = vmax.xlane.f32.xlu0 %v346
        %v348 = vpop.xlane.xlu0 %347
        %v349 = vsub.f32 %v343, %v348
        %v350 = vmul.f32 %v349, 1.442695
        %v351 = vpow.pop %v350
        %v352 = vsel %vm345, %v351, 0.0
        %353 = vadd.xlane.f32.xlu0 %v352
        %v354 = vpop.xlane.xlu0 %353
        %v355 = vrcp.pop %v354
        %v356 = vmul.f32 %v351, %v355
        %357 = vrot.lane.b32.xlu0 %v315, 64
        %v358 = vpop.permute.xlu0 %357
        %v361 = vsel %vm345, %v356, 0
        %363 = vmatpush.msra.mxu0 0.0
        %364 = vmatpush.msra.mxu0 0.0
        %365 = vmatpush.msra.mxu0 0.0
        %366 = vmatpush.msra.mxu0 0.0
        %367 = vmatpush.msra.mxu0 0.0
        %368 = vmatpush.msra.mxu0 0.0
        %369 = vmatpush.msra.mxu0 0.0
        %370 = vmatpush.msra.mxu0 0.0
        %371 = vmatpush.msra.mxu0 0.0
        %372 = vmatpush.msra.mxu0 0.0
        %373 = vmatpush.msra.mxu0 0.0
        %374 = vmatpush.msra.mxu0 0.0
        %375 = vmatpush.msra.mxu0 0.0
        %376 = vmatpush.msra.mxu0 0.0
        %377 = vmatpush.msra.mxu0 0.0
        %378 = vmatpush.msra.mxu0 %v358
        %379 = vmatmul.f32.gmra.mxu0 %v361
        %v380 = vpop.f32.mrf.mxu0
        %v381 = vadd.f32 0.0, %v380
        %382 = vdwg.mxu0
        %v383 = vld [vmem:[%s2] sm:$0xf]
        %384 = vrot.lane.b32.xlu0 %v315, 124
        %v385 = vpop.permute.xlu0 %384
        %386 = vrot.lane.b32.xlu0 %v315, 92
        %v387 = vpop.permute.xlu0 %386
        %v388 = vsel %vm320, %v385, 0
        %v390 = vsel %vm320, %v387, 0
        %392 = vmatpush.xpose.msra.mxu0 0.0
        %393 = vmatpush.xpose.msra.mxu0 0.0
        %394 = vmatpush.xpose.msra.mxu0 0.0
        %395 = vmatpush.xpose.msra.mxu0 0.0
        %396 = vmatpush.xpose.msra.mxu0 0.0
        %397 = vmatpush.xpose.msra.mxu0 0.0
        %398 = vmatpush.xpose.msra.mxu0 0.0
        %399 = vmatpush.xpose.msra.mxu0 0.0
        %400 = vmatpush.xpose.msra.mxu0 0.0
        %401 = vmatpush.xpose.msra.mxu0 0.0
        %402 = vmatpush.xpose.msra.mxu0 0.0
        %403 = vmatpush.xpose.msra.mxu0 0.0
        %404 = vmatpush.xpose.msra.mxu0 0.0
        %405 = vmatpush.xpose.msra.mxu0 0.0
        %406 = vmatpush.xpose.msra.mxu0 0.0
        %407 = vmatpush.xpose.msra.mxu0 %v390
        %408 = vmatmul.f32.gmra.mxu0 %v388
        %v409 = vpop.f32.mrf.mxu0
        %v410 = vadd.f32 0.0, %v409
        %411 = vdwg.mxu0
        %v412 = vsel %vm345, %v410, -inf
        %413 = vmax.xlane.f32.xlu0 %v412
        %v414 = vpop.xlane.xlu0 %413
        %v415 = vsub.f32 %v410, %v414
        %v416 = vmul.f32 %v415, 1.442695
        %v417 = vpow.pop %v416
        %v418 = vsel %vm345, %v417, 0.0
        %419 = vadd.xlane.f32.xlu0 %v418
        %v420 = vpop.xlane.xlu0 %419
        %v421 = vrcp.pop %v420
        %v422 = vmul.f32 %v417, %v421
        %423 = vrot.lane.b32.xlu0 %v315, 60
        %v424 = vpop.permute.xlu0 %423
        %v427 = vsel %vm345, %v422, 0
        %429 = vmatpush.msra.mxu0 0.0
        %430 = vmatpush.msra.mxu0 0.0
        %431 = vmatpush.msra.mxu0 0.0
        %432 = vmatpush.msra.mxu0 0.0
        %433 = vmatpush.msra.mxu0 0.0
        %434 = vmatpush.msra.mxu0 0.0
        %435 = vmatpush.msra.mxu0 0.0
        %436 = vmatpush.msra.mxu0 0.0
        %437 = vmatpush.msra.mxu0 0.0
        %438 = vmatpush.msra.mxu0 0.0
        %439 = vmatpush.msra.mxu0 0.0
        %440 = vmatpush.msra.mxu0 0.0
        %441 = vmatpush.msra.mxu0 0.0
        %442 = vmatpush.msra.mxu0 0.0
        %443 = vmatpush.msra.mxu0 0.0
        %444 = vmatpush.msra.mxu0 %v424
        %445 = vmatmul.f32.gmra.mxu0 %v427
        %v446 = vpop.f32.mrf.mxu0
        %v447 = vadd.f32 0.0, %v446
        %448 = vdwg.mxu0
        %v449 = vld [vmem:[%s2 + $0x4] sm:$0xf]
        %v451 = vsel %vm320, %v447, 0
        %vm453 = vcmask 1043456
        %v455 = vsel %vm453, %v449, 0
        %457 = vmatpush.msra.mxu0 0.0
        %458 = vmatpush.msra.mxu0 0.0
        %459 = vmatpush.msra.mxu0 0.0
        %460 = vmatpush.msra.mxu0 0.0
        %461 = vmatpush.msra.mxu0 0.0
        %462 = vmatpush.msra.mxu0 0.0
        %463 = vmatpush.msra.mxu0 0.0
        %464 = vmatpush.msra.mxu0 0.0
        %465 = vmatpush.msra.mxu0 0.0
        %466 = vmatpush.msra.mxu0 0.0
        %467 = vmatpush.msra.mxu0 0.0
        %468 = vmatpush.msra.mxu0 0.0
        %469 = vmatpush.msra.mxu0 0.0
        %470 = vmatpush.msra.mxu0 0.0
        %471 = vmatpush.msra.mxu0 0.0
        %472 = vmatpush.msra.mxu0 %v455
        %473 = vmatmul.f32.gmra.mxu0 %v451
        %v474 = vpop.f32.mrf.mxu0
        %v475 = vadd.f32 0.0, %v474
        %476 = vdwg.mxu0
        %v478 = vsel %vm320, %v381, 0
        %v481 = vsel %vm453, %v383, 0
        %483 = vmatpush.msra.mxu0 0.0
        %484 = vmatpush.msra.mxu0 0.0
        %485 = vmatpush.msra.mxu0 0.0
        %486 = vmatpush.msra.mxu0 0.0
        %487 = vmatpush.msra.mxu0 0.0
        %488 = vmatpush.msra.mxu0 0.0
        %489 = vmatpush.msra.mxu0 0.0
        %490 = vmatpush.msra.mxu0 0.0
        %491 = vmatpush.msra.mxu0 0.0
        %492 = vmatpush.msra.mxu0 0.0
        %493 = vmatpush.msra.mxu0 0.0
        %494 = vmatpush.msra.mxu0 0.0
        %495 = vmatpush.msra.mxu0 0.0
        %496 = vmatpush.msra.mxu0 0.0
        %497 = vmatpush.msra.mxu0 0.0
        %498 = vmatpush.msra.mxu0 %v481
        %499 = vmatmul.f32.gmra.mxu0 %v478
        %v500 = vpop.f32.mrf.mxu0
        %v501 = vadd.f32 %v475, %v500
        %502 = vdwg.mxu0
        %503 = vrot.lane.b32.xlu0 %v315, 120
        %v504 = vpop.permute.xlu0 %503
        %505 = vrot.lane.b32.xlu0 %v315, 88
        %v506 = vpop.permute.xlu0 %505
        %v507 = vsel %vm320, %v504, 0
        %v509 = vsel %vm320, %v506, 0
        %511 = vmatpush.xpose.msra.mxu0 0.0
        %512 = vmatpush.xpose.msra.mxu0 0.0
        %513 = vmatpush.xpose.msra.mxu0 0.0
        %514 = vmatpush.xpose.msra.mxu0 0.0
        %515 = vmatpush.xpose.msra.mxu0 0.0
        %516 = vmatpush.xpose.msra.mxu0 0.0
        %517 = vmatpush.xpose.msra.mxu0 0.0
        %518 = vmatpush.xpose.msra.mxu0 0.0
        %519 = vmatpush.xpose.msra.mxu0 0.0
        %520 = vmatpush.xpose.msra.mxu0 0.0
        %521 = vmatpush.xpose.msra.mxu0 0.0
        %522 = vmatpush.xpose.msra.mxu0 0.0
        %523 = vmatpush.xpose.msra.mxu0 0.0
        %524 = vmatpush.xpose.msra.mxu0 0.0
        %525 = vmatpush.xpose.msra.mxu0 0.0
        %526 = vmatpush.xpose.msra.mxu0 %v509
        %527 = vmatmul.f32.gmra.mxu0 %v507
        %v528 = vpop.f32.mrf.mxu0
        %v529 = vadd.f32 0.0, %v528
        %530 = vdwg.mxu0
        %v531 = vsel %vm345, %v529, -inf
        %532 = vmax.xlane.f32.xlu0 %v531
        %v533 = vpop.xlane.xlu0 %532
        %v534 = vsub.f32 %v529, %v533
        %v535 = vmul.f32 %v534, 1.442695
        %v536 = vpow.pop %v535
        %v537 = vsel %vm345, %v536, 0.0
        %538 = vadd.xlane.f32.xlu0 %v537
        %v539 = vpop.xlane.xlu0 %538
        %v540 = vrcp.pop %v539
        %v541 = vmul.f32 %v536, %v540
        %542 = vrot.lane.b32.xlu0 %v315, 56
        %v543 = vpop.permute.xlu0 %542
        %v546 = vsel %vm345, %v541, 0
        %548 = vmatpush.msra.mxu0 0.0
        %549 = vmatpush.msra.mxu0 0.0
        %550 = vmatpush.msra.mxu0 0.0
        %551 = vmatpush.msra.mxu0 0.0
        %552 = vmatpush.msra.mxu0 0.0
        %553 = vmatpush.msra.mxu0 0.0
        %554 = vmatpush.msra.mxu0 0.0
        %555 = vmatpush.msra.mxu0 0.0
        %556 = vmatpush.msra.mxu0 0.0
        %557 = vmatpush.msra.mxu0 0.0
        %558 = vmatpush.msra.mxu0 0.0
        %559 = vmatpush.msra.mxu0 0.0
        %560 = vmatpush.msra.mxu0 0.0
        %561 = vmatpush.msra.mxu0 0.0
        %562 = vmatpush.msra.mxu0 0.0
        %563 = vmatpush.msra.mxu0 %v543
        %564 = vmatmul.f32.gmra.mxu0 %v546
        %v565 = vpop.f32.mrf.mxu0
        %v566 = vadd.f32 0.0, %v565
        %567 = vdwg.mxu0
        %v568 = vld [vmem:[%s2 + $0x8] sm:$0xf]
        %v570 = vsel %vm320, %v566, 0
        %v573 = vsel %vm453, %v568, 0
        %575 = vmatpush.msra.mxu0 0.0
        %576 = vmatpush.msra.mxu0 0.0
        %577 = vmatpush.msra.mxu0 0.0
        %578 = vmatpush.msra.mxu0 0.0
        %579 = vmatpush.msra.mxu0 0.0
        %580 = vmatpush.msra.mxu0 0.0
        %581 = vmatpush.msra.mxu0 0.0
        %582 = vmatpush.msra.mxu0 0.0
        %583 = vmatpush.msra.mxu0 0.0
        %584 = vmatpush.msra.mxu0 0.0
        %585 = vmatpush.msra.mxu0 0.0
        %586 = vmatpush.msra.mxu0 0.0
        %587 = vmatpush.msra.mxu0 0.0
        %588 = vmatpush.msra.mxu0 0.0
        %589 = vmatpush.msra.mxu0 0.0
        %590 = vmatpush.msra.mxu0 %v573
        %591 = vmatmul.f32.gmra.mxu0 %v570
        %v592 = vpop.f32.mrf.mxu0
        %v593 = vadd.f32 0.0, %v592
        %594 = vdwg.mxu0
        %v595 = vadd.f32 %v501, %v593
        %596 = vrot.lane.b32.xlu0 %v315, 116
        %v597 = vpop.permute.xlu0 %596
        %598 = vrot.lane.b32.xlu0 %v315, 84
        %v599 = vpop.permute.xlu0 %598
        %v600 = vsel %vm320, %v597, 0
        %v602 = vsel %vm320, %v599, 0
        %604 = vmatpush.xpose.msra.mxu0 0.0
        %605 = vmatpush.xpose.msra.mxu0 0.0
        %606 = vmatpush.xpose.msra.mxu0 0.0
        %607 = vmatpush.xpose.msra.mxu0 0.0
        %608 = vmatpush.xpose.msra.mxu0 0.0
        %609 = vmatpush.xpose.msra.mxu0 0.0
        %610 = vmatpush.xpose.msra.mxu0 0.0
        %611 = vmatpush.xpose.msra.mxu0 0.0
        %612 = vmatpush.xpose.msra.mxu0 0.0
        %613 = vmatpush.xpose.msra.mxu0 0.0
        %614 = vmatpush.xpose.msra.mxu0 0.0
        %615 = vmatpush.xpose.msra.mxu0 0.0
        %616 = vmatpush.xpose.msra.mxu0 0.0
        %617 = vmatpush.xpose.msra.mxu0 0.0
        %618 = vmatpush.xpose.msra.mxu0 0.0
        %619 = vmatpush.xpose.msra.mxu0 %v602
        %620 = vmatmul.f32.gmra.mxu0 %v600
        %v621 = vpop.f32.mrf.mxu0
        %v622 = vadd.f32 0.0, %v621
        %623 = vdwg.mxu0
        %v624 = vsel %vm345, %v622, -inf
        %625 = vmax.xlane.f32.xlu0 %v624
        %v626 = vpop.xlane.xlu0 %625
        %v627 = vsub.f32 %v622, %v626
        %v628 = vmul.f32 %v627, 1.442695
        %v629 = vpow.pop %v628
        %v630 = vsel %vm345, %v629, 0.0
        %631 = vadd.xlane.f32.xlu0 %v630
        %v632 = vpop.xlane.xlu0 %631
        %v633 = vrcp.pop %v632
        %v634 = vmul.f32 %v629, %v633
        %635 = vrot.lane.b32.xlu0 %v315, 52
        %v636 = vpop.permute.xlu0 %635
        %v639 = vsel %vm345, %v634, 0
        %641 = vmatpush.msra.mxu0 0.0
        %642 = vmatpush.msra.mxu0 0.0
        %643 = vmatpush.msra.mxu0 0.0
        %644 = vmatpush.msra.mxu0 0.0
        %645 = vmatpush.msra.mxu0 0.0
        %646 = vmatpush.msra.mxu0 0.0
        %647 = vmatpush.msra.mxu0 0.0
        %648 = vmatpush.msra.mxu0 0.0
        %649 = vmatpush.msra.mxu0 0.0
        %650 = vmatpush.msra.mxu0 0.0
        %651 = vmatpush.msra.mxu0 0.0
        %652 = vmatpush.msra.mxu0 0.0
        %653 = vmatpush.msra.mxu0 0.0
        %654 = vmatpush.msra.mxu0 0.0
        %655 = vmatpush.msra.mxu0 0.0
        %656 = vmatpush.msra.mxu0 %v636
        %657 = vmatmul.f32.gmra.mxu0 %v639
        %v658 = vpop.f32.mrf.mxu0
        %v659 = vadd.f32 0.0, %v658
        %660 = vdwg.mxu0
        %v661 = vld [vmem:[%s2 + $0xc] sm:$0xf]
        %v663 = vsel %vm320, %v659, 0
        %v666 = vsel %vm453, %v661, 0
        %668 = vmatpush.msra.mxu0 0.0
        %669 = vmatpush.msra.mxu0 0.0
        %670 = vmatpush.msra.mxu0 0.0
        %671 = vmatpush.msra.mxu0 0.0
        %672 = vmatpush.msra.mxu0 0.0
        %673 = vmatpush.msra.mxu0 0.0
        %674 = vmatpush.msra.mxu0 0.0
        %675 = vmatpush.msra.mxu0 0.0
        %676 = vmatpush.msra.mxu0 0.0
        %677 = vmatpush.msra.mxu0 0.0
        %678 = vmatpush.msra.mxu0 0.0
        %679 = vmatpush.msra.mxu0 0.0
        %680 = vmatpush.msra.mxu0 0.0
        %681 = vmatpush.msra.mxu0 0.0
        %682 = vmatpush.msra.mxu0 0.0
        %683 = vmatpush.msra.mxu0 %v666
        %684 = vmatmul.f32.gmra.mxu0 %v663
        %v685 = vpop.f32.mrf.mxu0
        %v686 = vadd.f32 0.0, %v685
        %687 = vdwg.mxu0
        %v688 = vadd.f32 %v595, %v686
        %689 = vrot.lane.b32.xlu0 %v315, 112
        %v690 = vpop.permute.xlu0 %689
        %691 = vrot.lane.b32.xlu0 %v315, 80
        %v692 = vpop.permute.xlu0 %691
        %v693 = vsel %vm320, %v690, 0
        %v695 = vsel %vm320, %v692, 0
        %697 = vmatpush.xpose.msra.mxu0 0.0
        %698 = vmatpush.xpose.msra.mxu0 0.0
        %699 = vmatpush.xpose.msra.mxu0 0.0
        %700 = vmatpush.xpose.msra.mxu0 0.0
        %701 = vmatpush.xpose.msra.mxu0 0.0
        %702 = vmatpush.xpose.msra.mxu0 0.0
        %703 = vmatpush.xpose.msra.mxu0 0.0
        %704 = vmatpush.xpose.msra.mxu0 0.0
        %705 = vmatpush.xpose.msra.mxu0 0.0
        %706 = vmatpush.xpose.msra.mxu0 0.0
        %707 = vmatpush.xpose.msra.mxu0 0.0
        %708 = vmatpush.xpose.msra.mxu0 0.0
        %709 = vmatpush.xpose.msra.mxu0 0.0
        %710 = vmatpush.xpose.msra.mxu0 0.0
        %711 = vmatpush.xpose.msra.mxu0 0.0
        %712 = vmatpush.xpose.msra.mxu0 %v695
        %713 = vmatmul.f32.gmra.mxu0 %v693
        %v714 = vpop.f32.mrf.mxu0
        %v715 = vadd.f32 0.0, %v714
        %716 = vdwg.mxu0
        %v717 = vsel %vm345, %v715, -inf
        %718 = vmax.xlane.f32.xlu0 %v717
        %v719 = vpop.xlane.xlu0 %718
        %v720 = vsub.f32 %v715, %v719
        %v721 = vmul.f32 %v720, 1.442695
        %v722 = vpow.pop %v721
        %v723 = vsel %vm345, %v722, 0.0
        %724 = vadd.xlane.f32.xlu0 %v723
        %v725 = vpop.xlane.xlu0 %724
        %v726 = vrcp.pop %v725
        %v727 = vmul.f32 %v722, %v726
        %728 = vrot.lane.b32.xlu0 %v315, 48
        %v729 = vpop.permute.xlu0 %728
        %v732 = vsel %vm345, %v727, 0
        %734 = vmatpush.msra.mxu0 0.0
        %735 = vmatpush.msra.mxu0 0.0
        %736 = vmatpush.msra.mxu0 0.0
        %737 = vmatpush.msra.mxu0 0.0
        %738 = vmatpush.msra.mxu0 0.0
        %739 = vmatpush.msra.mxu0 0.0
        %740 = vmatpush.msra.mxu0 0.0
        %741 = vmatpush.msra.mxu0 0.0
        %742 = vmatpush.msra.mxu0 0.0
        %743 = vmatpush.msra.mxu0 0.0
        %744 = vmatpush.msra.mxu0 0.0
        %745 = vmatpush.msra.mxu0 0.0
        %746 = vmatpush.msra.mxu0 0.0
        %747 = vmatpush.msra.mxu0 0.0
        %748 = vmatpush.msra.mxu0 0.0
        %749 = vmatpush.msra.mxu0 %v729
        %750 = vmatmul.f32.gmra.mxu0 %v732
        %v751 = vpop.f32.mrf.mxu0
        %v752 = vadd.f32 0.0, %v751
        %753 = vdwg.mxu0
        %v754 = vld [vmem:[%s2 + $0x10] sm:$0xf]
        %v756 = vsel %vm320, %v752, 0
        %v759 = vsel %vm453, %v754, 0
        %761 = vmatpush.msra.mxu0 0.0
        %762 = vmatpush.msra.mxu0 0.0
        %763 = vmatpush.msra.mxu0 0.0
        %764 = vmatpush.msra.mxu0 0.0
        %765 = vmatpush.msra.mxu0 0.0
        %766 = vmatpush.msra.mxu0 0.0
        %767 = vmatpush.msra.mxu0 0.0
        %768 = vmatpush.msra.mxu0 0.0
        %769 = vmatpush.msra.mxu0 0.0
        %770 = vmatpush.msra.mxu0 0.0
        %771 = vmatpush.msra.mxu0 0.0
        %772 = vmatpush.msra.mxu0 0.0
        %773 = vmatpush.msra.mxu0 0.0
        %774 = vmatpush.msra.mxu0 0.0
        %775 = vmatpush.msra.mxu0 0.0
        %776 = vmatpush.msra.mxu0 %v759
        %777 = vmatmul.f32.gmra.mxu0 %v756
        %v778 = vpop.f32.mrf.mxu0
        %v779 = vadd.f32 0.0, %v778
        %780 = vdwg.mxu0
        %v781 = vadd.f32 %v688, %v779
        %782 = vrot.lane.b32.xlu0 %v315, 108
        %v783 = vpop.permute.xlu0 %782
        %784 = vrot.lane.b32.xlu0 %v315, 76
        %v785 = vpop.permute.xlu0 %784
        %v786 = vsel %vm320, %v783, 0
        %v788 = vsel %vm320, %v785, 0
        %790 = vmatpush.xpose.msra.mxu0 0.0
        %791 = vmatpush.xpose.msra.mxu0 0.0
        %792 = vmatpush.xpose.msra.mxu0 0.0
        %793 = vmatpush.xpose.msra.mxu0 0.0
        %794 = vmatpush.xpose.msra.mxu0 0.0
        %795 = vmatpush.xpose.msra.mxu0 0.0
        %796 = vmatpush.xpose.msra.mxu0 0.0
        %797 = vmatpush.xpose.msra.mxu0 0.0
        %798 = vmatpush.xpose.msra.mxu0 0.0
        %799 = vmatpush.xpose.msra.mxu0 0.0
        %800 = vmatpush.xpose.msra.mxu0 0.0
        %801 = vmatpush.xpose.msra.mxu0 0.0
        %802 = vmatpush.xpose.msra.mxu0 0.0
        %803 = vmatpush.xpose.msra.mxu0 0.0
        %804 = vmatpush.xpose.msra.mxu0 0.0
        %805 = vmatpush.xpose.msra.mxu0 %v788
        %806 = vmatmul.f32.gmra.mxu0 %v786
        %v807 = vpop.f32.mrf.mxu0
        %v808 = vadd.f32 0.0, %v807
        %809 = vdwg.mxu0
        %v810 = vsel %vm345, %v808, -inf
        %811 = vmax.xlane.f32.xlu0 %v810
        %v812 = vpop.xlane.xlu0 %811
        %v813 = vsub.f32 %v808, %v812
        %v814 = vmul.f32 %v813, 1.442695
        %v815 = vpow.pop %v814
        %v816 = vsel %vm345, %v815, 0.0
        %817 = vadd.xlane.f32.xlu0 %v816
        %v818 = vpop.xlane.xlu0 %817
        %v819 = vrcp.pop %v818
        %v820 = vmul.f32 %v815, %v819
        %821 = vrot.lane.b32.xlu0 %v315, 44
        %v822 = vpop.permute.xlu0 %821
        %v825 = vsel %vm345, %v820, 0
        %827 = vmatpush.msra.mxu0 0.0
        %828 = vmatpush.msra.mxu0 0.0
        %829 = vmatpush.msra.mxu0 0.0
        %830 = vmatpush.msra.mxu0 0.0
        %831 = vmatpush.msra.mxu0 0.0
        %832 = vmatpush.msra.mxu0 0.0
        %833 = vmatpush.msra.mxu0 0.0
        %834 = vmatpush.msra.mxu0 0.0
        %835 = vmatpush.msra.mxu0 0.0
        %836 = vmatpush.msra.mxu0 0.0
        %837 = vmatpush.msra.mxu0 0.0
        %838 = vmatpush.msra.mxu0 0.0
        %839 = vmatpush.msra.mxu0 0.0
        %840 = vmatpush.msra.mxu0 0.0
        %841 = vmatpush.msra.mxu0 0.0
        %842 = vmatpush.msra.mxu0 %v822
        %843 = vmatmul.f32.gmra.mxu0 %v825
        %v844 = vpop.f32.mrf.mxu0
        %v845 = vadd.f32 0.0, %v844
        %846 = vdwg.mxu0
        %v847 = vld [vmem:[%s2 + $0x14] sm:$0xf]
        %v849 = vsel %vm320, %v845, 0
        %v852 = vsel %vm453, %v847, 0
        %854 = vmatpush.msra.mxu0 0.0
        %855 = vmatpush.msra.mxu0 0.0
        %856 = vmatpush.msra.mxu0 0.0
        %857 = vmatpush.msra.mxu0 0.0
        %858 = vmatpush.msra.mxu0 0.0
        %859 = vmatpush.msra.mxu0 0.0
        %860 = vmatpush.msra.mxu0 0.0
        %861 = vmatpush.msra.mxu0 0.0
        %862 = vmatpush.msra.mxu0 0.0
        %863 = vmatpush.msra.mxu0 0.0
        %864 = vmatpush.msra.mxu0 0.0
        %865 = vmatpush.msra.mxu0 0.0
        %866 = vmatpush.msra.mxu0 0.0
        %867 = vmatpush.msra.mxu0 0.0
        %868 = vmatpush.msra.mxu0 0.0
        %869 = vmatpush.msra.mxu0 %v852
        %870 = vmatmul.f32.gmra.mxu0 %v849
        %v871 = vpop.f32.mrf.mxu0
        %v872 = vadd.f32 0.0, %v871
        %873 = vdwg.mxu0
        %v874 = vadd.f32 %v781, %v872
        %875 = vrot.lane.b32.xlu0 %v315, 104
        %v876 = vpop.permute.xlu0 %875
        %877 = vrot.lane.b32.xlu0 %v315, 72
        %v878 = vpop.permute.xlu0 %877
        %v879 = vsel %vm320, %v876, 0
        %v881 = vsel %vm320, %v878, 0
        %883 = vmatpush.xpose.msra.mxu0 0.0
        %884 = vmatpush.xpose.msra.mxu0 0.0
        %885 = vmatpush.xpose.msra.mxu0 0.0
        %886 = vmatpush.xpose.msra.mxu0 0.0
        %887 = vmatpush.xpose.msra.mxu0 0.0
        %888 = vmatpush.xpose.msra.mxu0 0.0
        %889 = vmatpush.xpose.msra.mxu0 0.0
        %890 = vmatpush.xpose.msra.mxu0 0.0
        %891 = vmatpush.xpose.msra.mxu0 0.0
        %892 = vmatpush.xpose.msra.mxu0 0.0
        %893 = vmatpush.xpose.msra.mxu0 0.0
        %894 = vmatpush.xpose.msra.mxu0 0.0
        %895 = vmatpush.xpose.msra.mxu0 0.0
        %896 = vmatpush.xpose.msra.mxu0 0.0
        %897 = vmatpush.xpose.msra.mxu0 0.0
        %898 = vmatpush.xpose.msra.mxu0 %v881
        %899 = vmatmul.f32.gmra.mxu0 %v879
        %v900 = vpop.f32.mrf.mxu0
        %v901 = vadd.f32 0.0, %v900
        %902 = vdwg.mxu0
        %v903 = vsel %vm345, %v901, -inf
        %904 = vmax.xlane.f32.xlu0 %v903
        %v905 = vpop.xlane.xlu0 %904
        %v906 = vsub.f32 %v901, %v905
        %v907 = vmul.f32 %v906, 1.442695
        %v908 = vpow.pop %v907
        %v909 = vsel %vm345, %v908, 0.0
        %910 = vadd.xlane.f32.xlu0 %v909
        %v911 = vpop.xlane.xlu0 %910
        %v912 = vrcp.pop %v911
        %v913 = vmul.f32 %v908, %v912
        %914 = vrot.lane.b32.xlu0 %v315, 40
        %v915 = vpop.permute.xlu0 %914
        %v918 = vsel %vm345, %v913, 0
        %920 = vmatpush.msra.mxu0 0.0
        %921 = vmatpush.msra.mxu0 0.0
        %922 = vmatpush.msra.mxu0 0.0
        %923 = vmatpush.msra.mxu0 0.0
        %924 = vmatpush.msra.mxu0 0.0
        %925 = vmatpush.msra.mxu0 0.0
        %926 = vmatpush.msra.mxu0 0.0
        %927 = vmatpush.msra.mxu0 0.0
        %928 = vmatpush.msra.mxu0 0.0
        %929 = vmatpush.msra.mxu0 0.0
        %930 = vmatpush.msra.mxu0 0.0
        %931 = vmatpush.msra.mxu0 0.0
        %932 = vmatpush.msra.mxu0 0.0
        %933 = vmatpush.msra.mxu0 0.0
        %934 = vmatpush.msra.mxu0 0.0
        %935 = vmatpush.msra.mxu0 %v915
        %936 = vmatmul.f32.gmra.mxu0 %v918
        %v937 = vpop.f32.mrf.mxu0
        %v938 = vadd.f32 0.0, %v937
        %939 = vdwg.mxu0
        %v940 = vld [vmem:[%s2 + $0x18] sm:$0xf]
        %v942 = vsel %vm320, %v938, 0
        %v945 = vsel %vm453, %v940, 0
        %947 = vmatpush.msra.mxu0 0.0
        %948 = vmatpush.msra.mxu0 0.0
        %949 = vmatpush.msra.mxu0 0.0
        %950 = vmatpush.msra.mxu0 0.0
        %951 = vmatpush.msra.mxu0 0.0
        %952 = vmatpush.msra.mxu0 0.0
        %953 = vmatpush.msra.mxu0 0.0
        %954 = vmatpush.msra.mxu0 0.0
        %955 = vmatpush.msra.mxu0 0.0
        %956 = vmatpush.msra.mxu0 0.0
        %957 = vmatpush.msra.mxu0 0.0
        %958 = vmatpush.msra.mxu0 0.0
        %959 = vmatpush.msra.mxu0 0.0
        %960 = vmatpush.msra.mxu0 0.0
        %961 = vmatpush.msra.mxu0 0.0
        %962 = vmatpush.msra.mxu0 %v945
        %963 = vmatmul.f32.gmra.mxu0 %v942
        %v964 = vpop.f32.mrf.mxu0
        %v965 = vadd.f32 0.0, %v964
        %966 = vdwg.mxu0
        %v967 = vadd.f32 %v874, %v965
        %968 = vrot.lane.b32.xlu0 %v315, 100
        %v969 = vpop.permute.xlu0 %968
        %970 = vrot.lane.b32.xlu0 %v315, 68
        %v971 = vpop.permute.xlu0 %970
        %v972 = vsel %vm320, %v969, 0
        %v974 = vsel %vm320, %v971, 0
        %976 = vmatpush.xpose.msra.mxu0 0.0
        %977 = vmatpush.xpose.msra.mxu0 0.0
        %978 = vmatpush.xpose.msra.mxu0 0.0
        %979 = vmatpush.xpose.msra.mxu0 0.0
        %980 = vmatpush.xpose.msra.mxu0 0.0
        %981 = vmatpush.xpose.msra.mxu0 0.0
        %982 = vmatpush.xpose.msra.mxu0 0.0
        %983 = vmatpush.xpose.msra.mxu0 0.0
        %984 = vmatpush.xpose.msra.mxu0 0.0
        %985 = vmatpush.xpose.msra.mxu0 0.0
        %986 = vmatpush.xpose.msra.mxu0 0.0
        %987 = vmatpush.xpose.msra.mxu0 0.0
        %988 = vmatpush.xpose.msra.mxu0 0.0
        %989 = vmatpush.xpose.msra.mxu0 0.0
        %990 = vmatpush.xpose.msra.mxu0 0.0
        %991 = vmatpush.xpose.msra.mxu0 %v974
        %992 = vmatmul.f32.gmra.mxu0 %v972
        %v993 = vpop.f32.mrf.mxu0
        %v994 = vadd.f32 0.0, %v993
        %995 = vdwg.mxu0
        %v996 = vsel %vm345, %v994, -inf
        %997 = vmax.xlane.f32.xlu0 %v996
        %v998 = vpop.xlane.xlu0 %997
        %v999 = vsub.f32 %v994, %v998
        %v1000 = vmul.f32 %v999, 1.442695
        %v1001 = vpow.pop %v1000
        %v1002 = vsel %vm345, %v1001, 0.0
        %1003 = vadd.xlane.f32.xlu0 %v1002
        %v1004 = vpop.xlane.xlu0 %1003
        %v1005 = vrcp.pop %v1004
        %v1006 = vmul.f32 %v1001, %v1005
        %1007 = vrot.lane.b32.xlu0 %v315, 36
        %v1008 = vpop.permute.xlu0 %1007
        %v1011 = vsel %vm345, %v1006, 0
        %1013 = vmatpush.msra.mxu0 0.0
        %1014 = vmatpush.msra.mxu0 0.0
        %1015 = vmatpush.msra.mxu0 0.0
        %1016 = vmatpush.msra.mxu0 0.0
        %1017 = vmatpush.msra.mxu0 0.0
        %1018 = vmatpush.msra.mxu0 0.0
        %1019 = vmatpush.msra.mxu0 0.0
        %1020 = vmatpush.msra.mxu0 0.0
        %1021 = vmatpush.msra.mxu0 0.0
        %1022 = vmatpush.msra.mxu0 0.0
        %1023 = vmatpush.msra.mxu0 0.0
        %1024 = vmatpush.msra.mxu0 0.0
        %1025 = vmatpush.msra.mxu0 0.0
        %1026 = vmatpush.msra.mxu0 0.0
        %1027 = vmatpush.msra.mxu0 0.0
        %1028 = vmatpush.msra.mxu0 %v1008
        %1029 = vmatmul.f32.gmra.mxu0 %v1011
        %v1030 = vpop.f32.mrf.mxu0
        %v1031 = vadd.f32 0.0, %v1030
        %1032 = vdwg.mxu0
        %v1033 = vld [vmem:[%s2 + $0x1c] sm:$0xf]
        %v1035 = vsel %vm320, %v1031, 0
        %v1038 = vsel %vm453, %v1033, 0
        %1040 = vmatpush.msra.mxu0 0.0
        %1041 = vmatpush.msra.mxu0 0.0
        %1042 = vmatpush.msra.mxu0 0.0
        %1043 = vmatpush.msra.mxu0 0.0
        %1044 = vmatpush.msra.mxu0 0.0
        %1045 = vmatpush.msra.mxu0 0.0
        %1046 = vmatpush.msra.mxu0 0.0
        %1047 = vmatpush.msra.mxu0 0.0
        %1048 = vmatpush.msra.mxu0 0.0
        %1049 = vmatpush.msra.mxu0 0.0
        %1050 = vmatpush.msra.mxu0 0.0
        %1051 = vmatpush.msra.mxu0 0.0
        %1052 = vmatpush.msra.mxu0 0.0
        %1053 = vmatpush.msra.mxu0 0.0
        %1054 = vmatpush.msra.mxu0 0.0
        %1055 = vmatpush.msra.mxu0 %v1038
        %1056 = vmatmul.f32.gmra.mxu0 %v1035
        %v1057 = vpop.f32.mrf.mxu0
        %v1058 = vadd.f32 0.0, %v1057
        %1059 = vdwg.mxu0
        %v1060 = vadd.f32 %v967, %v1058
        %v1061 = vadd.f32 %v284, %v1060
        %v1062 = vld [vmem:[#allocation5 + $0x1] sm:$0x1]
        %v1064 = vperm.slane %v1062, 0
        %v1066 = vadd.f32 %v1061, %v1064
        %v1067 = vsel %vm293, %v1066, 0.0
        %1068 = vadd.xlane.f32.xlu0 %v1067
        %v1069 = vpop.xlane.xlu0 %1068
        %v1070 = vrcp.pop 32.0
        %v1071 = vmul.f32 32.0, %v1070
        %v1072 = vsub.f32 1.0, %v1071
        %v1073 = vmul.f32 %v1070, %v1072
        %v1074 = vadd.f32 %v1070, %v1073
        %vm1075 = vweird.f32 %v1070
        %v1076 = vsel %vm1075, %v1070, %v1074
        %v1077 = vmul.f32 %v1069, %v1076
        %v1078 = vsub.f32 %v1066, %v1077
        %v1079 = vmul.f32 %v1078, %v1078
        %v1080 = vsel %vm293, %v1079, 0.0
        %1081 = vadd.xlane.f32.xlu0 %v1080
        %v1082 = vpop.xlane.xlu0 %1081
        %v1083 = vmul.f32 %v1082, %v1076
        %v1084 = vadd.f32 %v1083, 1e-05
        %v1085 = vrsqrt.pop %v1084
        %v1086 = vmul.f32 %v1085, %v1084
        %v1087 = vmul.f32 %v1086, %v1085
        %v1088 = vmul.f32 0.5, %v1087
        %v1089 = vsub.f32 1.5, %v1088
        %v1090 = vmul.f32 %v1085, %v1089
        %vm1091 = vweird.f32 %v1084
        %vm1092 = vweird.f32 %v1085
        %vm1093 = vmor %vm1091, %vm1092
        %v1094 = vsel %vm1093, %v1085, %v1090
        %v1095 = vmul.f32 %v1078, %v1094
        %v1096 = vld [vmem:[#allocation5 + $0x2] sm:$0x1]
        %v1098 = vperm.slane %v1096, 0
        %v1100 = vmul.f32 %v1095, %v1098
        %v1101 = vld [vmem:[#allocation5 + $0x3] sm:$0x1]
        %v1103 = vperm.slane %v1101, 0
        %v1105 = vadd.f32 %v1100, %v1103
        %v1106 = vld [vmem:[%s3] sm:$0xff]
        %v1107 = vld [vmem:[%s3 + $0x8] sm:$0xff]
        %v1108 = vld [vmem:[%s3 + $0x10] sm:$0xff]
        %v1109 = vld [vmem:[%s3 + $0x18] sm:$0xff]
        %v1110 = vld [vmem:[#allocation5 + $0x4] sm:$0x1]
        %v1112 = vperm.slane %v1110, 0
        %v1115 = vsel %vm293, %v1105, 0
        %1117 = vmatpush.msra.mxu0 0.0
        %1118 = vmatpush.msra.mxu0 0.0
        %1119 = vmatpush.msra.mxu0 0.0
        %1120 = vmatpush.msra.mxu0 0.0
        %1121 = vmatpush.msra.mxu0 0.0
        %1122 = vmatpush.msra.mxu0 0.0
        %1123 = vmatpush.msra.mxu0 0.0
        %1124 = vmatpush.msra.mxu0 0.0
        %1125 = vmatpush.msra.mxu0 0.0
        %1126 = vmatpush.msra.mxu0 0.0
        %1127 = vmatpush.msra.mxu0 0.0
        %1128 = vmatpush.msra.mxu0 0.0
        %1129 = vmatpush.msra.mxu0 %v1109
        %1130 = vmatpush.msra.mxu0 %v1108
        %1131 = vmatpush.msra.mxu0 %v1107
        %1132 = vmatpush.msra.mxu0 %v1106
        %1133 = vmatmul.f32.gmra.mxu0 %v1115
        %v1134 = vpop.f32.mrf.mxu0
        %v1135 = vadd.f32 %v1112, %v1134
        %1136 = vdwg.mxu0
        %v1137 = vmul.f32 %v1135, 0.5
        %v1138 = vmul.f32 %v1135, 0.044715
        %v1139 = vmul.f32 %v1138, %v1135
        %v1140 = vmul.f32 %v1139, %v1135
        %v1141 = vadd.f32 %v1135, %v1140
        %v1142 = vmul.f32 %v1141, 0.7978846
        %v1143 = vtanh.pop %v1142
        %v1144 = vadd.f32 %v1143, 1.0
        %v1145 = vmul.f32 %v1137, %v1144
        %v1146 = vld [vmem:[%s4] sm:$0xff]
        %v1147 = vld [vmem:[%s4 + $0x8] sm:$0xff]
        %v1148 = vld [vmem:[%s4 + $0x10] sm:$0xff]
        %v1149 = vld [vmem:[%s4 + $0x18] sm:$0xff]
        %v1150 = vld [vmem:[%s4 + $0x20] sm:$0xff]
        %v1151 = vld [vmem:[%s4 + $0x28] sm:$0xff]
        %v1152 = vld [vmem:[%s4 + $0x30] sm:$0xff]
        %v1153 = vld [vmem:[%s4 + $0x38] sm:$0xff]
        %v1154 = vld [vmem:[#allocation5 + $0x5] sm:$0x1]
        %v1156 = vperm.slane %v1154, 0
        %vm1158 = vcmask 523264
        %v1160 = vsel %vm1158, %v1145, 0
        %1162 = vmatpush.msra.mxu0 0.0
        %1163 = vmatpush.msra.mxu0 0.0
        %1164 = vmatpush.msra.mxu0 0.0
        %1165 = vmatpush.msra.mxu0 0.0
        %1166 = vmatpush.msra.mxu0 0.0
        %1167 = vmatpush.msra.mxu0 0.0
        %1168 = vmatpush.msra.mxu0 0.0
        %1169 = vmatpush.msra.mxu0 0.0
        %1170 = vmatpush.msra.mxu0 %v1153
        %1171 = vmatpush.msra.mxu0 %v1152
        %1172 = vmatpush.msra.mxu0 %v1151
        %1173 = vmatpush.msra.mxu0 %v1150
        %1174 = vmatpush.msra.mxu0 %v1149
        %1175 = vmatpush.msra.mxu0 %v1148
        %1176 = vmatpush.msra.mxu0 %v1147
        %1177 = vmatpush.msra.mxu0 %v1146
        %1178 = vmatmul.f32.gmra.mxu0 %v1160
        %v1179 = vpop.f32.mrf.mxu0
        %v1180 = vadd.f32 %v1156, %v1179
        %1181 = vdwg.mxu0
        %v1182 = vadd.f32 %v1105, %v1180
        %v1183 = vsel %vm293, %v1182, 0.0
        %1184 = vadd.xlane.f32.xlu0 %v1183
        %v1185 = vpop.xlane.xlu0 %1184
        %v1186 = vmul.f32 %v1185, %v1076
        %v1187 = vsub.f32 %v1182, %v1186
        %v1188 = vmul.f32 %v1187, %v1187
        %v1189 = vsel %vm293, %v1188, 0.0
        %1190 = vadd.xlane.f32.xlu0 %v1189
        %v1191 = vpop.xlane.xlu0 %1190
        %v1192 = vmul.f32 %v1191, %v1076
        %v1193 = vadd.f32 %v1192, 1e-05
        %v1194 = vrsqrt.pop %v1193
        %v1195 = vmul.f32 %v1194, %v1193
        %v1196 = vmul.f32 %v1195, %v1194
        %v1197 = vmul.f32 0.5, %v1196
        %v1198 = vsub.f32 1.5, %v1197
        %v1199 = vmul.f32 %v1194, %v1198
        %vm1200 = vweird.f32 %v1193
        %vm1201 = vweird.f32 %v1194
        %vm1202 = vmor %vm1200, %vm1201
        %v1203 = vsel %vm1202, %v1194, %v1199
        %v1204 = vmul.f32 %v1187, %v1203
        %v1205 = vld [vmem:[#allocation5 + $0x6] sm:$0x1]
        %v1207 = vperm.slane %v1205, 0
        %v1209 = vmul.f32 %v1204, %v1207
        %v1210 = vld [vmem:[#allocation5 + $0x7] sm:$0x1]
        %v1212 = vperm.slane %v1210, 0
        %v1214 = vadd.f32 %v1209, %v1212
        %1215 = vst.msk [vmem:[%s283] sm:$0xff] %vm293, %v1214
        %s1216 = sand.u32 %s163, 1
        %s1217 = scalar_lea.sflag [#allocation4], %s1216
        %s1218 = sand.u32 %s163, 1
        %s1219 = smul.addr %s1218, 8
        %s1220 = scalar_lea.vmem [#allocation7], %s1219
        // Predicated region
        $region53: #{fwd.1} parent=43 // pred_check
          %p1221 = pneg %p173
        $region54: #{fwd.1} parent=43 // pred_check_branch
          %1223 = sbr.rel (%p1221) target = $region56
        $region55: #{fwd.1} parent=43 // pred_region
          %1225 = vsyncadd %s1217, 0
          %s1226 = smul.addr %s24, 8
          %s1227 = scalar_lea.hbm %s6, %s1226
          %s1229 = sshll.u32 %s1220, 4
          %s1230 = int_to_ptr.vmem [resolvable:$true] %s1229
          %s1231 = sshll.u32 %s1227, 4
          %s1232 = int_to_ptr.hbm [resolvable:$true] %s1231
          %1234 = dma.vmem_to_hbm [thread:$0]  %s1230, 128, %s1232, %s1217
        $region56: #{fwd.1} parent=43 // pred_fallthru
          _
      $region44: #{fwd.1} parent=5 // pred_fallthru
        _
      %p1235 = scmp.le.s32.totalorder 2, %s19
      // Predicated region
      $region57: #{fwd.1} parent=5 // pred_check
        %p1236 = pneg %p1235
      $region58: #{fwd.1} parent=5 // pred_check_branch
        %1238 = sbr.rel (%p1236) target = $region60
      $region59: #{fwd.1} parent=5 // pred_region
        %s1239 = ssub.s32 %s19, 2
        // Predicated region
        $region61: #{fwd.1} parent=59 // pred_check
          %p1240 = pneg %p179
        $region62: #{fwd.1} parent=59 // pred_check_branch
          %1242 = sbr.rel (%p1240) target = $region64
        $region63: #{fwd.1} parent=59 // pred_region
          %s1243 = sand.u32 %s164, 1
          %s1244 = scalar_lea.sflag [#allocation4], %s1243
          %s1245 = sand.u32 %s164, 1
          %s1246 = smul.addr %s1245, 8
          %s1247 = scalar_lea.vmem [#allocation7], %s1246
          %1249 = dma.done %s1244, 128
        $region64: #{fwd.1} parent=59 // pred_fallthru
          _
      $region60: #{fwd.1} parent=5 // pred_fallthru
        _
    $region6: #{fwd.1} parent=1 // loop_footer
      %s23 = sadd.s32 1, %s19
    $region7: #{fwd.1} parent=1 // loop_footer_branch
      %18 = sbr.rel target = $region3
    $region8: #{fwd.1} parent=1 // loop_exit
      _
    %1250 = vsyncpa [#allocation3], 1
    %s1251 = scalar_lea.sflag [#allocation3], 1
    %1252 = vsyncpa %s1251, 1
    %1253 = vsyncpa [#allocation6], 1
    %1254 = vsyncpa [#allocation4], 1
    %s1255 = scalar_lea.sflag [#allocation4], 1
    %1256 = vsyncpa %s1255, 1

</llo_original>
